<compile_context>
chip_gen: v6e
topology: v6e:2x2x1
jax: 0.10.0
libtpu: 0.0.40
codegen_flags: <defaults>
</compile_context>

<pallas_src>
import jax
import jax.numpy as jnp
from jax.experimental import pallas as pl
from jax.experimental.pallas import tpu as pltpu

C_IN = 64
C_MID = 64
C_OUT = 648  # = 81 * 8


def _round_up(x, m):
    return ((x + m - 1) // m) * m


def _cdiv(a, b):
    return (a + b - 1) // b


def _choose_tm(S, N, budget=2048, min_parallel=4):
    """Pick the spatial (lane) tile: a multiple of 128, <= budget.

    Prefers an exact divisor of S (no ragged tail -> fully unmasked stores) and
    a tile small enough that the grid has >= min_parallel parallel steps so both
    TensorCores get work on v7x.  Falls back to the largest tile otherwise.
    """
    cap = max(128, min(_round_up(budget, 128), _round_up(S, 128)))
    exact = [t for t in range(cap, 0, -128) if S % t == 0]
    ragged = list(range(cap, 0, -128))
    for cands in (exact, ragged):
        if not cands:
            continue
        for t in cands:  # largest-first: first hit = largest tile meeting target
            if N * _cdiv(S, t) >= min_parallel:
                return t
        return cands[0]
    return 128


def _reshape_conv_kernel(x_ref, w1_ref, b1_ref, w2_ref, b2_ref, o_ref):
    # x_ref:  (1, 64, TM)   channel-major spatial tile of one image
    # w1_ref: (64, 64)      conv1 weight [out, in], f32
    # b1_ref: (64, 1)       f32
    # w2_ref: (648, 64)     conv2 weight [out, in], f32
    # b2_ref: (648, 1)      f32
    # o_ref:  (1, 648, TM)  NCHW-contiguous output tile
    x = x_ref[0]                                                        # (64, TM)
    h = jnp.dot(w1_ref[...], x, preferred_element_type=jnp.float32)     # (64, TM)
    h = jnp.maximum(h + b1_ref[...], 0.0)                               # ReLU
    out = jnp.dot(w2_ref[...], h,
                  preferred_element_type=jnp.float32) + b2_ref[...]     # (648, TM)
    o_ref[0] = out.astype(o_ref.dtype)


def reshape_forward(fusion_nchw, w1, b1, w2, b2, *, tm_budget=2048, out_dtype=None):
    """fusion_nchw: (N, 64, H, W).  Returns (N, 81, 8, H, W).

    Weights use the torch Conv2d layout (out, in) with the 1x1 dims squeezed:
      w1: (64, 64), b1: (64,), w2: (648, 64), b2: (648,)
    out_dtype: defaults to float32 (matches the PyTorch module); pass
      jnp.bfloat16 to halve the writeback traffic if the consumer allows it.
    """
    N, C, H, W = fusion_nchw.shape
    assert C == C_IN
    S = H * W
    out_dtype = jnp.float32 if out_dtype is None else out_dtype

    tm = _choose_tm(S, N, budget=tm_budget)
    grid = (N, _cdiv(S, tm))

    # NCHW is already channel-major: (N, 64, H, W) -> (N, 64, S) is free.
    # No padding: a partial last block is handled in-kernel (masked stores).
    x = fusion_nchw.reshape(N, C_IN, S)

    w1_f = w1.astype(jnp.float32)
    w2_f = w2.astype(jnp.float32)
    b1_2d = b1.reshape(C_MID, 1).astype(jnp.float32)
    b2_2d = b2.reshape(C_OUT, 1).astype(jnp.float32)

    flops = 2 * N * S * C_IN * (C_MID + C_OUT)
    bytes_accessed = (N * S * (C_IN * x.dtype.itemsize
                               + C_OUT * jnp.dtype(out_dtype).itemsize)
                      + (C_IN * C_MID + C_MID * C_OUT + C_MID + C_OUT) * 4)

    out = pl.pallas_call(
        _reshape_conv_kernel,
        out_shape=jax.ShapeDtypeStruct((N, C_OUT, S), out_dtype),
        grid_spec=pltpu.PrefetchScalarGridSpec(
            num_scalar_prefetch=0,
            grid=grid,
            in_specs=[
                pl.BlockSpec((1, C_IN, tm), lambda n, s: (n, 0, s)),
                pl.BlockSpec((C_MID, C_IN), lambda n, s: (0, 0)),
                pl.BlockSpec((C_MID, 1), lambda n, s: (0, 0)),
                pl.BlockSpec((C_OUT, C_MID), lambda n, s: (0, 0)),
                pl.BlockSpec((C_OUT, 1), lambda n, s: (0, 0)),
            ],
            out_specs=pl.BlockSpec((1, C_OUT, tm), lambda n, s: (n, 0, s)),
        ),
        compiler_params=pltpu.CompilerParams(
            dimension_semantics=("parallel", "parallel"),
            # <= scoped default on v6e/v7x, raises v5e's 16 MiB default; safely
            # under physical VMEM on all generations.
            vmem_limit_bytes=32 * 1024 * 1024,
        ),
        cost_estimate=pl.CostEstimate(
            flops=flops, transcendentals=0, bytes_accessed=bytes_accessed),
    )(x, w1_f, b1_2d, w2_f, b2_2d)

    # Contiguous (N, 648, S) == (N, 648, H, W) -> (N, 81, 8, H, W): identical to
    # torch's .view (channel index = 81_idx * 8 + 8_idx), and a free reshape.
    return out.reshape(N, 81, 8, H, W)


def _init_params(key):
    k1, k2, k3, k4 = jax.random.split(key, 4)
    # torch Conv2d default init ~ uniform(-1/sqrt(fan_in), 1/sqrt(fan_in)); fan_in = 64
    bound = 1.0 / jnp.sqrt(jnp.float32(C_IN))
    w1 = jax.random.uniform(k1, (C_MID, C_IN), jnp.float32, -bound, bound)
    b1 = jax.random.uniform(k2, (C_MID,), jnp.float32, -bound, bound)
    w2 = jax.random.uniform(k3, (C_OUT, C_MID), jnp.float32, -bound, bound)
    b2 = jax.random.uniform(k4, (C_OUT,), jnp.float32, -bound, bound)
    return w1, b1, w2, b2


if __name__ == "__main__":
    key = jax.random.PRNGKey(0)
    kx1, kx2, kp = jax.random.split(key, 3)

    w1, b1, w2, b2 = _init_params(kp)

    def ref_fn(fusion):
        n, _, h_, w_ = fusion.shape
        xr = fusion.reshape(n, C_IN, h_ * w_)
        hh = jnp.maximum(jnp.einsum("oi,nis->nos", w1, xr) + b1[None, :, None], 0.0)
        rr = jnp.einsum("oi,nis->nos", w2, hh) + b2[None, :, None]
        return rr.reshape(n, 81, 8, h_, w_)

    # Case 1: spatial size divisible by 128 (fully unmasked, lane-dense stores).
    N, H, W = 2, 16, 16
    fusion = jax.random.normal(kx1, (N, C_IN, H, W), jnp.float32)
    out = jax.block_until_ready(reshape_forward(fusion, w1, b1, w2, b2))
    assert out.shape == (N, 81, 8, H, W), out.shape
    ref = ref_fn(fusion)
    err = float(jnp.max(jnp.abs(out - ref)))
    assert jnp.allclose(out, ref, atol=2e-2, rtol=2e-2), err

    # Case 2: ragged spatial size (S = 15*13 = 195): exercises the masked
    # partial-last-block path (no wrapper pad / post-slice copies).
    N2, H2, W2 = 1, 15, 13
    fusion2 = jax.random.normal(kx2, (N2, C_IN, H2, W2), jnp.float32)
    out2 = jax.block_until_ready(reshape_forward(fusion2, w1, b1, w2, b2))
    assert out2.shape == (N2, 81, 8, H2, W2), out2.shape
    ref2 = ref_fn(fusion2)
    err2 = float(jnp.max(jnp.abs(out2 - ref2)))
    assert jnp.allclose(out2, ref2, atol=2e-2, rtol=2e-2), err2

    print("KERNEL_OK")
</pallas_src>

<mosaic_0001>
module attributes {stable_mosaic.version = 11 : i64} {
  func.func @_reshape_conv_kernel(%arg0: i32, %arg1: i32, %arg2: memref<1x64x128xf32, #tpu.memory_space<vmem>>, %arg3: memref<64x64xf32, #tpu.memory_space<vmem>>, %arg4: memref<64x1xf32, #tpu.memory_space<vmem>>, %arg5: memref<648x64xf32, #tpu.memory_space<vmem>>, %arg6: memref<648x1xf32, #tpu.memory_space<vmem>>, %arg7: memref<1x648x128xf32, #tpu.memory_space<vmem>>) attributes {dimension_semantics = [#tpu.dimension_semantics<parallel>, #tpu.dimension_semantics<parallel>], iteration_bounds = array<i64: 2, 2>, scalar_prefetch = 0 : i64, scratch_operands = 0 : i64, tpu.core_type = #tpu.core_type<tc>, window_params = [{transform_indices = @transform_0, window_bounds = array<i64: 1, 64, 128>}, {pipeline_mode = #tpu.pipeline_mode<synchronous>, transform_indices = @transform_1, window_bounds = array<i64: 64, 64>}, {pipeline_mode = #tpu.pipeline_mode<synchronous>, transform_indices = @transform_2, window_bounds = array<i64: 64, 1>}, {pipeline_mode = #tpu.pipeline_mode<synchronous>, transform_indices = @transform_3, window_bounds = array<i64: 648, 64>}, {pipeline_mode = #tpu.pipeline_mode<synchronous>, transform_indices = @transform_4, window_bounds = array<i64: 648, 1>}, {transform_indices = @transform_5, window_bounds = array<i64: 1, 648, 128>}]} {
    %c0 = arith.constant 0 : index
    %c0_0 = arith.constant 0 : index
    %c0_1 = arith.constant 0 : index
    %0 = vector.load %arg2[%c0, %c0_0, %c0_1] : memref<1x64x128xf32, #tpu.memory_space<vmem>>, vector<1x64x128xf32>
    %1 = vector.shape_cast %0 : vector<1x64x128xf32> to vector<64x128xf32>
    %c0_2 = arith.constant 0 : index
    %c0_3 = arith.constant 0 : index
    %2 = vector.load %arg3[%c0_2, %c0_3] : memref<64x64xf32, #tpu.memory_space<vmem>>, vector<64x64xf32>
    %cst = arith.constant dense<0.000000e+00> : vector<64x128xf32>
    %3 = tpu.matmul %2, %1, %cst {dimension_numbers = #tpu.dot_dimension_numbers<[1], [0], [0], [1], [0, 0, 1, 1], [], []>} : vector<64x64xf32>, vector<64x128xf32>, vector<64x128xf32> -> vector<64x128xf32>
    %c0_4 = arith.constant 0 : index
    %c0_5 = arith.constant 0 : index
    %4 = vector.load %arg4[%c0_4, %c0_5] : memref<64x1xf32, #tpu.memory_space<vmem>>, vector<64x1xf32>
    %5 = vector.broadcast %4 : vector<64x1xf32> to vector<64x128xf32>
    %6 = arith.addf %3, %5 : vector<64x128xf32>
    %cst_6 = arith.constant 0.000000e+00 : f32
    %7 = vector.broadcast %cst_6 : f32 to vector<64x128xf32>
    %8 = arith.maximumf %6, %7 : vector<64x128xf32>
    %c0_7 = arith.constant 0 : index
    %c0_8 = arith.constant 0 : index
    %9 = vector.load %arg5[%c0_7, %c0_8] : memref<648x64xf32, #tpu.memory_space<vmem>>, vector<648x64xf32>
    %cst_9 = arith.constant dense<0.000000e+00> : vector<648x128xf32>
    %10 = tpu.matmul %9, %8, %cst_9 {dimension_numbers = #tpu.dot_dimension_numbers<[1], [0], [0], [1], [0, 0, 1, 1], [], []>} : vector<648x64xf32>, vector<64x128xf32>, vector<648x128xf32> -> vector<648x128xf32>
    %c0_10 = arith.constant 0 : index
    %c0_11 = arith.constant 0 : index
    %11 = vector.load %arg6[%c0_10, %c0_11] : memref<648x1xf32, #tpu.memory_space<vmem>>, vector<648x1xf32>
    %12 = vector.broadcast %11 : vector<648x1xf32> to vector<648x128xf32>
    %13 = arith.addf %10, %12 : vector<648x128xf32>
    %c0_12 = arith.constant 0 : index
    %c0_13 = arith.constant 0 : index
    %c0_14 = arith.constant 0 : index
    %14 = vector.load %arg7[%c0_12, %c0_13, %c0_14] : memref<1x648x128xf32, #tpu.memory_space<vmem>>, vector<1x648x128xf32>
    %15 = vector.shape_cast %14 : vector<1x648x128xf32> to vector<648x128xf32>
    %16 = vector.shape_cast %13 : vector<648x128xf32> to vector<1x648x128xf32>
    tpu.vector_store %arg7[%c0_12, %c0_13, %c0_14], %16 {strides = array<i32>} : memref<1x648x128xf32, #tpu.memory_space<vmem>>, vector<1x648x128xf32>,
    return
  }
  func.func @transform_0(%arg0: i32, %arg1: i32) -> (i32, i32, i32) {
    %c0_i32 = arith.constant 0 : i32
    %c0_i32_0 = arith.constant 0 : i32
    return %arg0, %c0_i32, %arg1 : i32, i32, i32
  }
  func.func @transform_1(%arg0: i32, %arg1: i32) -> (i32, i32) {
    %c0_i32 = arith.constant 0 : i32
    %c0_i32_0 = arith.constant 0 : i32
    %c0_i32_1 = arith.constant 0 : i32
    return %c0_i32, %c0_i32_0 : i32, i32
  }
  func.func @transform_2(%arg0: i32, %arg1: i32) -> (i32, i32) {
    %c0_i32 = arith.constant 0 : i32
    %c0_i32_0 = arith.constant 0 : i32
    %c0_i32_1 = arith.constant 0 : i32
    return %c0_i32, %c0_i32_0 : i32, i32
  }
  func.func @transform_3(%arg0: i32, %arg1: i32) -> (i32, i32) {
    %c0_i32 = arith.constant 0 : i32
    %c0_i32_0 = arith.constant 0 : i32
    %c0_i32_1 = arith.constant 0 : i32
    return %c0_i32, %c0_i32_0 : i32, i32
  }
  func.func @transform_4(%arg0: i32, %arg1: i32) -> (i32, i32) {
    %c0_i32 = arith.constant 0 : i32
    %c0_i32_0 = arith.constant 0 : i32
    %c0_i32_1 = arith.constant 0 : i32
    return %c0_i32, %c0_i32_0 : i32, i32
  }
  func.func @transform_5(%arg0: i32, %arg1: i32) -> (i32, i32, i32) {
    %c0_i32 = arith.constant 0 : i32
    %c0_i32_0 = arith.constant 0 : i32
    return %arg0, %c0_i32, %arg1 : i32, i32, i32
  }
}

</mosaic_0001>

<llo_original>
// kernel: tpu_custom_call.1
$region0: #{tpu_custom_call.1}
  #allocation0 [shape = 'u32[]', space=smem, size = 0x4, offset = 0x4, fixed_abs, tag = 'smem constant byte address 0x4 - core index']
  #allocation1 [shape = 'u32[144,128]{1,0:T(1,128)}', space=vmem, size = 0x12000, scoped, tag = 'internal scratch']
  %s0 = inlined_call_operand.hbm [shape: f32[2,64,256], index: 0, kind: input, shape index: {}]
  %s1 = inlined_call_operand.hbm [shape: f32[64,64], index: 1, kind: input, shape index: {}]
  %s2 = inlined_call_operand.vmem [shape: f32[64,1], index: 2, kind: input, shape index: {}]
  %s3 = inlined_call_operand.vmem [shape: f32[648,64], index: 3, kind: input, shape index: {}]
  %s4 = inlined_call_operand.vmem [shape: f32[648,1], index: 4, kind: input, shape index: {}]
  %s5 = inlined_call_operand.hbm [shape: f32[2,648,256], index: 5, kind: output, shape index: {}]
  %s6 = sld [smem:[#allocation0]]
  $region61: #{tpu_custom_call.1} parent=0
    _
  %s8 = ssub.s32 1, %s6
  %s9 = scalar_select 0, %s8, %s6
  $region1: #{tpu_custom_call.1} parent=0
    #allocation2 [shape = 'u8[65536]{0}', space=vmem, size = 0x10000, scoped, tag = 'input window, operand 0']
    #allocation3 [shape = 's32[2]{0}', space=sflag, size = 0x8, scoped, tag = 'scoped memory for tpu_custom_call.1']
    #allocation4 [shape = 's32[2]{0}', space=sflag, size = 0x8, scoped, tag = 'scoped memory for tpu_custom_call.1']
    #allocation5 [shape = 'u8[32768]{0}', space=vmem, size = 0x8000, scoped, tag = 'input window, operand 1, single buffered']
    #allocation6 [shape = 's32[1]{0}', space=sflag, size = 0x4, scoped, tag = 'scoped memory for tpu_custom_call.1']
    #allocation7 [shape = 'u8[663552]{0}', space=vmem, size = 0xa2000, scoped, tag = 'output window, operand 0']
    %10 = vsyncpa [#allocation3], 0
    %s11 = scalar_lea.sflag [#allocation3], 1
    %12 = vsyncpa %s11, 0
    %13 = vsyncpa [#allocation6], 0
    %14 = vsyncpa [#allocation4], 0
    %s15 = scalar_lea.sflag [#allocation4], 1
    %16 = vsyncpa %s15, 0
    loop: start=0, step=1, limit=6
    $region2: #{tpu_custom_call.1} parent=1 // loop_pre_header
      _
    $region3: #{tpu_custom_call.1} parent=1 // loop_header
      %s18 = sphi 0, %s22
      %p19 = scmp.ge.s32.totalorder %s18, 6
      %s25 = sphi 0, %s37
      %s26 = sphi 0, %s33
      %s27 = sphi 0, %s25
      %s28 = sphi 0, %s26
      %s29 = sphi 0, %s27
      %s30 = sphi 0, %s28
      %s42 = sphi 0, %s44
      %s45 = sphi 0, %s42
      %s46 = sphi 0, %s45
      %s62 = sphi 0, %s46
      %s66 = sphi 0, %s66
      %s68 = sphi 0, %s66
      %s69 = sphi 0, %s68
      %s83 = sphi 0, %s69
      %s87 = sphi 0, %s87
      %s89 = sphi 0, %s87
      %s90 = sphi 0, %s89
      %s104 = sphi 0, %s90
      %s108 = sphi 0, %s108
      %s110 = sphi 0, %s108
      %s111 = sphi 0, %s110
      %s125 = sphi 0, %s111
      %s129 = sphi 0, %s129
      %s131 = sphi 0, %s129
      %s132 = sphi 0, %s131
      %s146 = sphi 0, %s132
      %s154 = sphi 0, %s156
      %s157 = sphi 0, %s154
      %s158 = sphi 0, %s157
      %s174 = sphi 0, %s158
    $region4: #{tpu_custom_call.1} parent=1 // loop_header_branch
      %21 = sbr.rel (%p19) target = $region8
    $region5: #{tpu_custom_call.1} parent=1 // loop_body
      %s23 = ssub.s32 %s18, 1
      %s24 = ssub.s32 %s18, 2
      %s31 = sadd.s32 1, %s26
      %p32 = scmp.ge.s32.totalorder %s31, 2
      %s33 = scalar_select %p32, 0, %s31
      %s34 = sadd.s32 1, %s25
      %s35 = scalar_select %p32, %s34, %s25
      %p36 = scmp.ge.s32.totalorder %s35, 2
      %s37 = scalar_select %p36, 0, %s35
      %s38 = ssub.s32 %s25, %s37
      %s39 = ssub.s32 %s26, %s33
      %s40 = sor.u32 %s38, %s39
      %p41 = scmp.eq.s32.totalorder %s40, 0
      %s43 = sadd.s32 %s42, 1
      %s44 = scalar_select %p41, %s42, %s43
      %p47 = pneg %p41
      %p48 = scmp.eq.s32.totalorder %s18, 3
      %p49 = por %p47, %p48
      %p50 = scmp.ne.s32.totalorder %s42, %s45
      %p51 = scmp.eq.s32.totalorder %s18, 0
      %p52 = por %p50, %p51
      %p53 = scmp.ne.s32.totalorder %s42, %s45
      %p54 = scmp.eq.s32.totalorder %s23, 3
      %p55 = por %p53, %p54
      %p56 = scmp.ne.s32.totalorder %s45, %s46
      %p57 = scmp.eq.s32.totalorder %s23, 0
      %p58 = por %p56, %p57
      %p59 = scmp.ne.s32.totalorder %s45, %s46
      %p60 = scmp.eq.s32.totalorder %s24, 3
      %p61 = por %p59, %p60
      %p63 = scmp.ne.s32.totalorder %s46, %s62
      %p64 = scmp.eq.s32.totalorder %s24, 0
      %p65 = por %p63, %p64
      %s67 = sadd.s32 %s66, 1
      %p70 = scmp.eq.s32.totalorder %s18, 3
      %p71 = scmp.ne.s32.totalorder %s66, %s68
      %p72 = scmp.eq.s32.totalorder %s18, 0
      %p73 = por %p71, %p72
      %p74 = scmp.ne.s32.totalorder %s66, %s68
      %p75 = scmp.eq.s32.totalorder %s23, 3
      %p76 = por %p74, %p75
      %p77 = scmp.ne.s32.totalorder %s68, %s69
      %p78 = scmp.eq.s32.totalorder %s23, 0
      %p79 = por %p77, %p78
      %p80 = scmp.ne.s32.totalorder %s68, %s69
      %p81 = scmp.eq.s32.totalorder %s24, 3
      %p82 = por %p80, %p81
      %p84 = scmp.ne.s32.totalorder %s69, %s83
      %p85 = scmp.eq.s32.totalorder %s24, 0
      %p86 = por %p84, %p85
      %s88 = sadd.s32 %s87, 1
      %p91 = scmp.eq.s32.totalorder %s18, 3
      %p92 = scmp.ne.s32.totalorder %s87, %s89
      %p93 = scmp.eq.s32.totalorder %s18, 0
      %p94 = por %p92, %p93
      %p95 = scmp.ne.s32.totalorder %s87, %s89
      %p96 = scmp.eq.s32.totalorder %s23, 3
      %p97 = por %p95, %p96
      %p98 = scmp.ne.s32.totalorder %s89, %s90
      %p99 = scmp.eq.s32.totalorder %s23, 0
      %p100 = por %p98, %p99
      %p101 = scmp.ne.s32.totalorder %s89, %s90
      %p102 = scmp.eq.s32.totalorder %s24, 3
      %p103 = por %p101, %p102
      %p105 = scmp.ne.s32.totalorder %s90, %s104
      %p106 = scmp.eq.s32.totalorder %s24, 0
      %p107 = por %p105, %p106
      %s109 = sadd.s32 %s108, 1
      %p112 = scmp.eq.s32.totalorder %s18, 3
      %p113 = scmp.ne.s32.totalorder %s108, %s110
      %p114 = scmp.eq.s32.totalorder %s18, 0
      %p115 = por %p113, %p114
      %p116 = scmp.ne.s32.totalorder %s108, %s110
      %p117 = scmp.eq.s32.totalorder %s23, 3
      %p118 = por %p116, %p117
      %p119 = scmp.ne.s32.totalorder %s110, %s111
      %p120 = scmp.eq.s32.totalorder %s23, 0
      %p121 = por %p119, %p120
      %p122 = scmp.ne.s32.totalorder %s110, %s111
      %p123 = scmp.eq.s32.totalorder %s24, 3
      %p124 = por %p122, %p123
      %p126 = scmp.ne.s32.totalorder %s111, %s125
      %p127 = scmp.eq.s32.totalorder %s24, 0
      %p128 = por %p126, %p127
      %s130 = sadd.s32 %s129, 1
      %p133 = scmp.eq.s32.totalorder %s18, 3
      %p134 = scmp.ne.s32.totalorder %s129, %s131
      %p135 = scmp.eq.s32.totalorder %s18, 0
      %p136 = por %p134, %p135
      %p137 = scmp.ne.s32.totalorder %s129, %s131
      %p138 = scmp.eq.s32.totalorder %s23, 3
      %p139 = por %p137, %p138
      %p140 = scmp.ne.s32.totalorder %s131, %s132
      %p141 = scmp.eq.s32.totalorder %s23, 0
      %p142 = por %p140, %p141
      %p143 = scmp.ne.s32.totalorder %s131, %s132
      %p144 = scmp.eq.s32.totalorder %s24, 3
      %p145 = por %p143, %p144
      %p147 = scmp.ne.s32.totalorder %s132, %s146
      %p148 = scmp.eq.s32.totalorder %s24, 0
      %p149 = por %p147, %p148
      %s150 = ssub.s32 %s25, %s37
      %s151 = ssub.s32 %s26, %s33
      %s152 = sor.u32 %s150, %s151
      %p153 = scmp.eq.s32.totalorder %s152, 0
      %s155 = sadd.s32 %s154, 1
      %s156 = scalar_select %p153, %s154, %s155
      %p159 = pneg %p153
      %p160 = scmp.eq.s32.totalorder %s18, 3
      %p161 = por %p159, %p160
      %p162 = scmp.ne.s32.totalorder %s154, %s157
      %p163 = scmp.eq.s32.totalorder %s18, 0
      %p164 = por %p162, %p163
      %p165 = scmp.ne.s32.totalorder %s154, %s157
      %p166 = scmp.eq.s32.totalorder %s23, 3
      %p167 = por %p165, %p166
      %p168 = scmp.ne.s32.totalorder %s157, %s158
      %p169 = scmp.eq.s32.totalorder %s23, 0
      %p170 = por %p168, %p169
      %p171 = scmp.ne.s32.totalorder %s157, %s158
      %p172 = scmp.eq.s32.totalorder %s24, 3
      %p173 = por %p171, %p172
      %p175 = scmp.ne.s32.totalorder %s158, %s174
      %p176 = scmp.eq.s32.totalorder %s24, 0
      %p177 = por %p175, %p176
      %p178 = scmp.le.s32.totalorder 1, %s18
      %p179 = scmp.lt.s32.totalorder %s18, 5
      %p180 = pnand %p178, %p179
      %p181 = pneg %p180
      // Predicated region
      $region9: #{tpu_custom_call.1} parent=5 // pred_check
        _
      $region10: #{tpu_custom_call.1} parent=5 // pred_check_branch
        %183 = sbr.rel (%p180) target = $region12
      $region11: #{tpu_custom_call.1} parent=5 // pred_region
        %s184 = ssub.s32 %s18, 1
        // Predicated region
        $region13: #{tpu_custom_call.1} parent=11 // pred_check
          %p185 = pneg %p79
        $region14: #{tpu_custom_call.1} parent=11 // pred_check_branch
          %187 = sbr.rel (%p185) target = $region16
        $region15: #{tpu_custom_call.1} parent=11 // pred_region
          %s189 = ssub.s32 1024, 1024
          %190 = vsyncadd [#allocation6], %s189
          %s191 = sshll.u32 [#allocation5], 4
          %s192 = int_to_ptr.vmem [resolvable:$true] %s191
          %197 = dma.hbm_to_vmem [thread:$0]  %s1, 1024, %s192, [#allocation6], 128, 128, 8
        $region16: #{tpu_custom_call.1} parent=11 // pred_fallthru
          _
        // Predicated region
        $region17: #{tpu_custom_call.1} parent=11 // pred_check
          %p198 = pneg %p100
        $region18: #{tpu_custom_call.1} parent=11 // pred_check_branch
          %200 = sbr.rel (%p198) target = $region20
        $region19: #{tpu_custom_call.1} parent=11 // pred_region
          _
        $region20: #{tpu_custom_call.1} parent=11 // pred_fallthru
          _
        // Predicated region
        $region21: #{tpu_custom_call.1} parent=11 // pred_check
          %p201 = pneg %p121
        $region22: #{tpu_custom_call.1} parent=11 // pred_check_branch
          %203 = sbr.rel (%p201) target = $region24
        $region23: #{tpu_custom_call.1} parent=11 // pred_region
          _
        $region24: #{tpu_custom_call.1} parent=11 // pred_fallthru
          _
        // Predicated region
        $region25: #{tpu_custom_call.1} parent=11 // pred_check
          %p204 = pneg %p142
        $region26: #{tpu_custom_call.1} parent=11 // pred_check_branch
          %206 = sbr.rel (%p204) target = $region28
        $region27: #{tpu_custom_call.1} parent=11 // pred_region
          _
        $region28: #{tpu_custom_call.1} parent=11 // pred_fallthru
          _
      $region12: #{tpu_custom_call.1} parent=5 // pred_fallthru
        _
      %p207 = scmp.lt.s32.totalorder %s18, 4
      // Predicated region
      $region29: #{tpu_custom_call.1} parent=5 // pred_check
        %p208 = pneg %p207
      $region30: #{tpu_custom_call.1} parent=5 // pred_check_branch
        %210 = sbr.rel (%p208) target = $region32
      $region31: #{tpu_custom_call.1} parent=5 // pred_region
        // Predicated region
        $region33: #{tpu_custom_call.1} parent=31 // pred_check
          %p211 = pneg %p52
        $region34: #{tpu_custom_call.1} parent=31 // pred_check_branch
          %213 = sbr.rel (%p211) target = $region36
        $region35: #{tpu_custom_call.1} parent=31 // pred_region
          %s214 = sand.u32 %s42, 1
          %s215 = scalar_lea.sflag [#allocation3], %s214
          %s216 = sand.u32 %s42, 1
          %s217 = smul.addr %s216, 64
          %s218 = scalar_lea.vmem [#allocation2], %s217
          %s220 = ssub.s32 1024, 1024
          %221 = vsyncadd %s215, %s220
          %s222 = smul.addr %s25, 16
          %s223 = sadd.s32 %s26, %s222
          %s224 = smul.addr %s223, 128
          %s225 = scalar_lea.hbm %s0, %s224
          %s226 = sshll.u32 %s218, 4
          %s227 = int_to_ptr.vmem [resolvable:$true] %s226
          %232 = dma.hbm_to_vmem [thread:$0]  %s225, 1024, %s227, %s215, 256, 128, 8
        $region36: #{tpu_custom_call.1} parent=31 // pred_fallthru
          _
      $region32: #{tpu_custom_call.1} parent=5 // pred_fallthru
        _
      %p233 = scmp.le.s32.totalorder 1, %s18
      %p234 = scmp.lt.s32.totalorder %s18, 5
      %p235 = pnand %p233, %p234
      %p236 = pneg %p235
      // Predicated region
      $region37: #{tpu_custom_call.1} parent=5 // pred_check
        _
      $region38: #{tpu_custom_call.1} parent=5 // pred_check_branch
        %238 = sbr.rel (%p235) target = $region40
      $region39: #{tpu_custom_call.1} parent=5 // pred_region
        %s239 = ssub.s32 %s18, 1
        %s240 = sand.u32 %s45, 1
        %s241 = scalar_lea.sflag [#allocation3], %s240
        %s242 = sand.u32 %s45, 1
        %s243 = smul.addr %s242, 64
        %s244 = scalar_lea.vmem [#allocation2], %s243
        // Predicated region
        $region41: #{tpu_custom_call.1} parent=39 // pred_check
          %p245 = pneg %p58
        $region42: #{tpu_custom_call.1} parent=39 // pred_check_branch
          %247 = sbr.rel (%p245) target = $region44
        $region43: #{tpu_custom_call.1} parent=39 // pred_region
          %248 = dma.done %s241, 1024
        $region44: #{tpu_custom_call.1} parent=39 // pred_fallthru
          _
        // Predicated region
        $region45: #{tpu_custom_call.1} parent=39 // pred_check
          %p249 = pneg %p79
        $region46: #{tpu_custom_call.1} parent=39 // pred_check_branch
          %251 = sbr.rel (%p249) target = $region48
        $region47: #{tpu_custom_call.1} parent=39 // pred_region
          %252 = dma.done [#allocation6], 1024
        $region48: #{tpu_custom_call.1} parent=39 // pred_fallthru
          _
        %s253 = sand.u32 %s45, 1
        %s254 = scalar_lea.sflag [#allocation3], %s253
        %s255 = sand.u32 %s45, 1
        %s256 = smul.addr %s255, 64
        %s257 = scalar_lea.vmem [#allocation2], %s256
        %p258 = pneg %p58
        %p259 = pneg %p55
        %p260 = pneg %p79
        %p261 = pneg %p76
        %p262 = pneg %p100
        %p263 = pneg %p97
        %p264 = pneg %p121
        %p265 = pneg %p118
        %p266 = pneg %p142
        %p267 = pneg %p139
        %p268 = pneg %p170
        %p269 = pneg %p167
        %s270 = sand.u32 %s157, 1
        %s271 = scalar_lea.sflag [#allocation4], %s270
        %s272 = sand.u32 %s157, 1
        %s273 = smul.addr %s272, 648
        %s274 = scalar_lea.vmem [#allocation7], %s273
        %v275 = vld [vmem:[%s244] sm:$0xff]
        %v276 = vld [vmem:[%s244 + $0x8] sm:$0xff]
        %v277 = vld [vmem:[%s244 + $0x10] sm:$0xff]
        %v278 = vld [vmem:[%s244 + $0x18] sm:$0xff]
        %v279 = vld [vmem:[%s244 + $0x20] sm:$0xff]
        %v280 = vld [vmem:[%s244 + $0x28] sm:$0xff]
        %v281 = vld [vmem:[%s244 + $0x30] sm:$0xff]
        %v282 = vld [vmem:[%s244 + $0x38] sm:$0xff]
        %v283 = vld [vmem:[#allocation5] sm:$0xff]
        %v284 = vld [vmem:[#allocation5 + $0x8] sm:$0xff]
        %v285 = vld [vmem:[#allocation5 + $0x10] sm:$0xff]
        %v286 = vld [vmem:[#allocation5 + $0x18] sm:$0xff]
        %v287 = vld [vmem:[#allocation5 + $0x20] sm:$0xff]
        %v288 = vld [vmem:[#allocation5 + $0x28] sm:$0xff]
        %v289 = vld [vmem:[#allocation5 + $0x30] sm:$0xff]
        %v290 = vld [vmem:[#allocation5 + $0x38] sm:$0xff]
        %v291 = vld [vmem:[%s2] sm:$0xff]
        %v292 = vld [vmem:[%s2 + $0x8] sm:$0xff]
        %v293 = vld [vmem:[%s2 + $0x10] sm:$0xff]
        %v294 = vld [vmem:[%s2 + $0x18] sm:$0xff]
        %v295 = vld [vmem:[%s2 + $0x20] sm:$0xff]
        %v296 = vld [vmem:[%s2 + $0x28] sm:$0xff]
        %v297 = vld [vmem:[%s2 + $0x30] sm:$0xff]
        %v298 = vld [vmem:[%s2 + $0x38] sm:$0xff]
        %300 = vset.pattern.permute.xlu0 0
        %301 = vperm.xlu0 %300, %v291
        %v302 = vpop.permute.xlu0 %301
        %305 = vset.pattern.permute.xlu0 0
        %306 = vperm.xlu0 %305, %v292
        %v307 = vpop.permute.xlu0 %306
        %310 = vset.pattern.permute.xlu0 0
        %311 = vperm.xlu0 %310, %v293
        %v312 = vpop.permute.xlu0 %311
        %315 = vset.pattern.permute.xlu0 0
        %316 = vperm.xlu0 %315, %v294
        %v317 = vpop.permute.xlu0 %316
        %320 = vset.pattern.permute.xlu0 0
        %321 = vperm.xlu0 %320, %v295
        %v322 = vpop.permute.xlu0 %321
        %325 = vset.pattern.permute.xlu0 0
        %326 = vperm.xlu0 %325, %v296
        %v327 = vpop.permute.xlu0 %326
        %330 = vset.pattern.permute.xlu0 0
        %331 = vperm.xlu0 %330, %v297
        %v332 = vpop.permute.xlu0 %331
        %335 = vset.pattern.permute.xlu0 0
        %336 = vperm.xlu0 %335, %v298
        %v337 = vpop.permute.xlu0 %336
        %vm339 = vcmask 523264
        %v341 = vsel %vm339, %v283, 0
        %v344 = vsel %vm339, %v284, 0
        %v347 = vsel %vm339, %v285, 0
        %v350 = vsel %vm339, %v286, 0
        %v353 = vsel %vm339, %v287, 0
        %v356 = vsel %vm339, %v288, 0
        %v359 = vsel %vm339, %v289, 0
        %v362 = vsel %vm339, %v290, 0
        %364 = vmatprep.subr.mxu0 0.0
        %365 = vmatpush1.msra.mxu0 0.0
        %366 = vmatprep.subr.mxu0 0.0
        %367 = vmatpush1.msra.mxu0 0.0
        %368 = vmatprep.subr.mxu0 0.0
        %369 = vmatpush1.msra.mxu0 0.0
        %370 = vmatprep.subr.mxu0 0.0
        %371 = vmatpush1.msra.mxu0 0.0
        %372 = vmatprep.subr.mxu0 0.0
        %373 = vmatpush1.msra.mxu0 0.0
        %374 = vmatprep.subr.mxu0 0.0
        %375 = vmatpush1.msra.mxu0 0.0
        %376 = vmatprep.subr.mxu0 0.0
        %377 = vmatpush1.msra.mxu0 0.0
        %378 = vmatprep.subr.mxu0 0.0
        %379 = vmatpush1.msra.mxu0 0.0
        %380 = vmatprep.subr.mxu0 0.0
        %381 = vmatpush1.msra.mxu0 %v282
        %382 = vmatprep.subr.mxu0 0.0
        %383 = vmatpush1.msra.mxu0 %v281
        %384 = vmatprep.subr.mxu0 0.0
        %385 = vmatpush1.msra.mxu0 %v280
        %386 = vmatprep.subr.mxu0 0.0
        %387 = vmatpush1.msra.mxu0 %v279
        %388 = vmatprep.subr.mxu0 0.0
        %389 = vmatpush1.msra.mxu0 %v278
        %390 = vmatprep.subr.mxu0 0.0
        %391 = vmatpush1.msra.mxu0 %v277
        %392 = vmatprep.subr.mxu0 0.0
        %393 = vmatpush1.msra.mxu0 %v276
        %394 = vmatprep.subr.mxu0 0.0
        %395 = vmatpush1.msra.mxu0 %v275
        %396 = vmatprep.subr.mxu0 0.0
        %397 = vmatpush2.msra.mxu0 0.0
        %398 = vmatprep.subr.mxu0 0.0
        %399 = vmatpush2.msra.mxu0 0.0
        %400 = vmatprep.subr.mxu0 0.0
        %401 = vmatpush2.msra.mxu0 0.0
        %402 = vmatprep.subr.mxu0 0.0
        %403 = vmatpush2.msra.mxu0 0.0
        %404 = vmatprep.subr.mxu0 0.0
        %405 = vmatpush2.msra.mxu0 0.0
        %406 = vmatprep.subr.mxu0 0.0
        %407 = vmatpush2.msra.mxu0 0.0
        %408 = vmatprep.subr.mxu0 0.0
        %409 = vmatpush2.msra.mxu0 0.0
        %410 = vmatprep.subr.mxu0 0.0
        %411 = vmatpush2.msra.mxu0 0.0
        %412 = vmatprep.subr.mxu0 0.0
        %413 = vmatpush2.msra.mxu0 0.0
        %414 = vmatprep.subr.mxu0 0.0
        %415 = vmatpush2.msra.mxu0 0.0
        %416 = vmatprep.subr.mxu0 0.0
        %417 = vmatpush2.msra.mxu0 0.0
        %418 = vmatprep.subr.mxu0 0.0
        %419 = vmatpush2.msra.mxu0 0.0
        %420 = vmatprep.subr.mxu0 0.0
        %421 = vmatpush2.msra.mxu0 0.0
        %422 = vmatprep.subr.mxu0 0.0
        %423 = vmatpush2.msra.mxu0 0.0
        %424 = vmatprep.subr.mxu0 0.0
        %425 = vmatpush2.msra.mxu0 0.0
        %426 = vmatprep.subr.mxu0 0.0
        %427 = vmatpush2.msra.mxu0 0.0
        %428 = vmatprep.mubr.f32.mxu0 0.0
        %429 = vmatmul.mubr.f32.gmra.mxu0 %v341
        %v430 = vpop.f32.mrf.mxu0
        %v431 = vadd.f32 %v302, %v430
        %v432 = vpop.f32.mrf.mxu0
        %433 = vmatprep.mubr.f32.mxu0 0.0
        %434 = vmatmul.mubr.f32.gmra.mxu0 %v344
        %v435 = vpop.f32.mrf.mxu0
        %v436 = vadd.f32 %v307, %v435
        %v437 = vpop.f32.mrf.mxu0
        %438 = vmatprep.mubr.f32.mxu0 0.0
        %439 = vmatmul.mubr.f32.gmra.mxu0 %v347
        %v440 = vpop.f32.mrf.mxu0
        %v441 = vadd.f32 %v312, %v440
        %v442 = vpop.f32.mrf.mxu0
        %443 = vmatprep.mubr.f32.mxu0 0.0
        %444 = vmatmul.mubr.f32.gmra.mxu0 %v350
        %v445 = vpop.f32.mrf.mxu0
        %v446 = vadd.f32 %v317, %v445
        %v447 = vpop.f32.mrf.mxu0
        %448 = vmatprep.mubr.f32.mxu0 0.0
        %449 = vmatmul.mubr.f32.gmra.mxu0 %v353
        %v450 = vpop.f32.mrf.mxu0
        %v451 = vadd.f32 %v322, %v450
        %v452 = vpop.f32.mrf.mxu0
        %453 = vmatprep.mubr.f32.mxu0 0.0
        %454 = vmatmul.mubr.f32.gmra.mxu0 %v356
        %v455 = vpop.f32.mrf.mxu0
        %v456 = vadd.f32 %v327, %v455
        %v457 = vpop.f32.mrf.mxu0
        %458 = vmatprep.mubr.f32.mxu0 0.0
        %459 = vmatmul.mubr.f32.gmra.mxu0 %v359
        %v460 = vpop.f32.mrf.mxu0
        %v461 = vadd.f32 %v332, %v460
        %v462 = vpop.f32.mrf.mxu0
        %463 = vmatprep.mubr.f32.mxu0 0.0
        %464 = vmatmul.mubr.f32.gmra.mxu0 %v362
        %v465 = vpop.f32.mrf.mxu0
        %v466 = vadd.f32 %v337, %v465
        %v467 = vpop.f32.mrf.mxu0
        %468 = vdwg.mxu0
        %v469 = vmax.f32 %v431, 0.0
        %v470 = vmax.f32 %v436, 0.0
        %v471 = vmax.f32 %v441, 0.0
        %v472 = vmax.f32 %v446, 0.0
        %v473 = vmax.f32 %v451, 0.0
        %v474 = vmax.f32 %v456, 0.0
        %v475 = vmax.f32 %v461, 0.0
        %v476 = vmax.f32 %v466, 0.0
        %v477 = vld [vmem:[%s3] sm:$0xff]
        %v478 = vld [vmem:[%s3 + $0x8] sm:$0xff]
        %v479 = vld [vmem:[%s3 + $0x10] sm:$0xff]
        %v480 = vld [vmem:[%s3 + $0x18] sm:$0xff]
        %v481 = vld [vmem:[%s3 + $0x20] sm:$0xff]
        %v482 = vld [vmem:[%s3 + $0x28] sm:$0xff]
        %v483 = vld [vmem:[%s3 + $0x30] sm:$0xff]
        %v484 = vld [vmem:[%s3 + $0x38] sm:$0xff]
        %v485 = vld [vmem:[%s3 + $0x40] sm:$0xff]
        %v486 = vld [vmem:[%s3 + $0x48] sm:$0xff]
        %v487 = vld [vmem:[%s3 + $0x50] sm:$0xff]
        %v488 = vld [vmem:[%s3 + $0x58] sm:$0xff]
        %v489 = vld [vmem:[%s3 + $0x60] sm:$0xff]
        %v490 = vld [vmem:[%s3 + $0x68] sm:$0xff]
        %v491 = vld [vmem:[%s3 + $0x70] sm:$0xff]
        %v492 = vld [vmem:[%s3 + $0x78] sm:$0xff]
        %v493 = vld [vmem:[%s3 + $0x80] sm:$0xff]
        %v494 = vld [vmem:[%s3 + $0x88] sm:$0xff]
        %v495 = vld [vmem:[%s3 + $0x90] sm:$0xff]
        %v496 = vld [vmem:[%s3 + $0x98] sm:$0xff]
        %v497 = vld [vmem:[%s3 + $0xa0] sm:$0xff]
        %v498 = vld [vmem:[%s3 + $0xa8] sm:$0xff]
        %v499 = vld [vmem:[%s3 + $0xb0] sm:$0xff]
        %v500 = vld [vmem:[%s3 + $0xb8] sm:$0xff]
        %v501 = vld [vmem:[%s3 + $0xc0] sm:$0xff]
        %v502 = vld [vmem:[%s3 + $0xc8] sm:$0xff]
        %v503 = vld [vmem:[%s3 + $0xd0] sm:$0xff]
        %v504 = vld [vmem:[%s3 + $0xd8] sm:$0xff]
        %v505 = vld [vmem:[%s3 + $0xe0] sm:$0xff]
        %v506 = vld [vmem:[%s3 + $0xe8] sm:$0xff]
        %v507 = vld [vmem:[%s3 + $0xf0] sm:$0xff]
        %v508 = vld [vmem:[%s3 + $0xf8] sm:$0xff]
        %v509 = vld [vmem:[%s3 + $0x100] sm:$0xff]
        %v510 = vld [vmem:[%s3 + $0x108] sm:$0xff]
        %v511 = vld [vmem:[%s3 + $0x110] sm:$0xff]
        %v512 = vld [vmem:[%s3 + $0x118] sm:$0xff]
        %v513 = vld [vmem:[%s3 + $0x120] sm:$0xff]
        %v514 = vld [vmem:[%s3 + $0x128] sm:$0xff]
        %v515 = vld [vmem:[%s3 + $0x130] sm:$0xff]
        %v516 = vld [vmem:[%s3 + $0x138] sm:$0xff]
        %v517 = vld [vmem:[%s3 + $0x140] sm:$0xff]
        %v518 = vld [vmem:[%s3 + $0x148] sm:$0xff]
        %v519 = vld [vmem:[%s3 + $0x150] sm:$0xff]
        %v520 = vld [vmem:[%s3 + $0x158] sm:$0xff]
        %v521 = vld [vmem:[%s3 + $0x160] sm:$0xff]
        %v522 = vld [vmem:[%s3 + $0x168] sm:$0xff]
        %v523 = vld [vmem:[%s3 + $0x170] sm:$0xff]
        %v524 = vld [vmem:[%s3 + $0x178] sm:$0xff]
        %v525 = vld [vmem:[%s3 + $0x180] sm:$0xff]
        %v526 = vld [vmem:[%s3 + $0x188] sm:$0xff]
        %v527 = vld [vmem:[%s3 + $0x190] sm:$0xff]
        %v528 = vld [vmem:[%s3 + $0x198] sm:$0xff]
        %v529 = vld [vmem:[%s3 + $0x1a0] sm:$0xff]
        %v530 = vld [vmem:[%s3 + $0x1a8] sm:$0xff]
        %v531 = vld [vmem:[%s3 + $0x1b0] sm:$0xff]
        %v532 = vld [vmem:[%s3 + $0x1b8] sm:$0xff]
        %v533 = vld [vmem:[%s3 + $0x1c0] sm:$0xff]
        %v534 = vld [vmem:[%s3 + $0x1c8] sm:$0xff]
        %v535 = vld [vmem:[%s3 + $0x1d0] sm:$0xff]
        %v536 = vld [vmem:[%s3 + $0x1d8] sm:$0xff]
        %v537 = vld [vmem:[%s3 + $0x1e0] sm:$0xff]
        %v538 = vld [vmem:[%s3 + $0x1e8] sm:$0xff]
        %v539 = vld [vmem:[%s3 + $0x1f0] sm:$0xff]
        %v540 = vld [vmem:[%s3 + $0x1f8] sm:$0xff]
        %v541 = vld [vmem:[%s3 + $0x200] sm:$0xff]
        %v542 = vld [vmem:[%s3 + $0x208] sm:$0xff]
        %v543 = vld [vmem:[%s3 + $0x210] sm:$0xff]
        %v544 = vld [vmem:[%s3 + $0x218] sm:$0xff]
        %v545 = vld [vmem:[%s3 + $0x220] sm:$0xff]
        %v546 = vld [vmem:[%s3 + $0x228] sm:$0xff]
        %v547 = vld [vmem:[%s3 + $0x230] sm:$0xff]
        %v548 = vld [vmem:[%s3 + $0x238] sm:$0xff]
        %v549 = vld [vmem:[%s3 + $0x240] sm:$0xff]
        %v550 = vld [vmem:[%s3 + $0x248] sm:$0xff]
        %v551 = vld [vmem:[%s3 + $0x250] sm:$0xff]
        %v552 = vld [vmem:[%s3 + $0x258] sm:$0xff]
        %v553 = vld [vmem:[%s3 + $0x260] sm:$0xff]
        %v554 = vld [vmem:[%s3 + $0x268] sm:$0xff]
        %v555 = vld [vmem:[%s3 + $0x270] sm:$0xff]
        %v556 = vld [vmem:[%s3 + $0x278] sm:$0xff]
        %v557 = vld [vmem:[%s3 + $0x280] sm:$0xff]
        %v558 = vld [vmem:[%s4] sm:$0xff]
        %v559 = vld [vmem:[%s4 + $0x8] sm:$0xff]
        %v560 = vld [vmem:[%s4 + $0x10] sm:$0xff]
        %v561 = vld [vmem:[%s4 + $0x18] sm:$0xff]
        %v562 = vld [vmem:[%s4 + $0x20] sm:$0xff]
        %v563 = vld [vmem:[%s4 + $0x28] sm:$0xff]
        %v564 = vld [vmem:[%s4 + $0x30] sm:$0xff]
        %v565 = vld [vmem:[%s4 + $0x38] sm:$0xff]
        %v566 = vld [vmem:[%s4 + $0x40] sm:$0xff]
        %v567 = vld [vmem:[%s4 + $0x48] sm:$0xff]
        %v568 = vld [vmem:[%s4 + $0x50] sm:$0xff]
        %v569 = vld [vmem:[%s4 + $0x58] sm:$0xff]
        %v570 = vld [vmem:[%s4 + $0x60] sm:$0xff]
        %v571 = vld [vmem:[%s4 + $0x68] sm:$0xff]
        %v572 = vld [vmem:[%s4 + $0x70] sm:$0xff]
        %v573 = vld [vmem:[%s4 + $0x78] sm:$0xff]
        %v574 = vld [vmem:[%s4 + $0x80] sm:$0xff]
        %v575 = vld [vmem:[%s4 + $0x88] sm:$0xff]
        %v576 = vld [vmem:[%s4 + $0x90] sm:$0xff]
        %v577 = vld [vmem:[%s4 + $0x98] sm:$0xff]
        %v578 = vld [vmem:[%s4 + $0xa0] sm:$0xff]
        %v579 = vld [vmem:[%s4 + $0xa8] sm:$0xff]
        %v580 = vld [vmem:[%s4 + $0xb0] sm:$0xff]
        %v581 = vld [vmem:[%s4 + $0xb8] sm:$0xff]
        %v582 = vld [vmem:[%s4 + $0xc0] sm:$0xff]
        %v583 = vld [vmem:[%s4 + $0xc8] sm:$0xff]
        %v584 = vld [vmem:[%s4 + $0xd0] sm:$0xff]
        %v585 = vld [vmem:[%s4 + $0xd8] sm:$0xff]
        %v586 = vld [vmem:[%s4 + $0xe0] sm:$0xff]
        %v587 = vld [vmem:[%s4 + $0xe8] sm:$0xff]
        %v588 = vld [vmem:[%s4 + $0xf0] sm:$0xff]
        %v589 = vld [vmem:[%s4 + $0xf8] sm:$0xff]
        %v590 = vld [vmem:[%s4 + $0x100] sm:$0xff]
        %v591 = vld [vmem:[%s4 + $0x108] sm:$0xff]
        %v592 = vld [vmem:[%s4 + $0x110] sm:$0xff]
        %v593 = vld [vmem:[%s4 + $0x118] sm:$0xff]
        %v594 = vld [vmem:[%s4 + $0x120] sm:$0xff]
        %v595 = vld [vmem:[%s4 + $0x128] sm:$0xff]
        %v596 = vld [vmem:[%s4 + $0x130] sm:$0xff]
        %v597 = vld [vmem:[%s4 + $0x138] sm:$0xff]
        %v598 = vld [vmem:[%s4 + $0x140] sm:$0xff]
        %v599 = vld [vmem:[%s4 + $0x148] sm:$0xff]
        %v600 = vld [vmem:[%s4 + $0x150] sm:$0xff]
        %v601 = vld [vmem:[%s4 + $0x158] sm:$0xff]
        %v602 = vld [vmem:[%s4 + $0x160] sm:$0xff]
        %v603 = vld [vmem:[%s4 + $0x168] sm:$0xff]
        %v604 = vld [vmem:[%s4 + $0x170] sm:$0xff]
        %v605 = vld [vmem:[%s4 + $0x178] sm:$0xff]
        %v606 = vld [vmem:[%s4 + $0x180] sm:$0xff]
        %v607 = vld [vmem:[%s4 + $0x188] sm:$0xff]
        %v608 = vld [vmem:[%s4 + $0x190] sm:$0xff]
        %v609 = vld [vmem:[%s4 + $0x198] sm:$0xff]
        %v610 = vld [vmem:[%s4 + $0x1a0] sm:$0xff]
        %v611 = vld [vmem:[%s4 + $0x1a8] sm:$0xff]
        %v612 = vld [vmem:[%s4 + $0x1b0] sm:$0xff]
        %v613 = vld [vmem:[%s4 + $0x1b8] sm:$0xff]
        %v614 = vld [vmem:[%s4 + $0x1c0] sm:$0xff]
        %v615 = vld [vmem:[%s4 + $0x1c8] sm:$0xff]
        %v616 = vld [vmem:[%s4 + $0x1d0] sm:$0xff]
        %v617 = vld [vmem:[%s4 + $0x1d8] sm:$0xff]
        %v618 = vld [vmem:[%s4 + $0x1e0] sm:$0xff]
        %v619 = vld [vmem:[%s4 + $0x1e8] sm:$0xff]
        %v620 = vld [vmem:[%s4 + $0x1f0] sm:$0xff]
        %v621 = vld [vmem:[%s4 + $0x1f8] sm:$0xff]
        %v622 = vld [vmem:[%s4 + $0x200] sm:$0xff]
        %v623 = vld [vmem:[%s4 + $0x208] sm:$0xff]
        %v624 = vld [vmem:[%s4 + $0x210] sm:$0xff]
        %v625 = vld [vmem:[%s4 + $0x218] sm:$0xff]
        %v626 = vld [vmem:[%s4 + $0x220] sm:$0xff]
        %v627 = vld [vmem:[%s4 + $0x228] sm:$0xff]
        %v628 = vld [vmem:[%s4 + $0x230] sm:$0xff]
        %v629 = vld [vmem:[%s4 + $0x238] sm:$0xff]
        %v630 = vld [vmem:[%s4 + $0x240] sm:$0xff]
        %v631 = vld [vmem:[%s4 + $0x248] sm:$0xff]
        %v632 = vld [vmem:[%s4 + $0x250] sm:$0xff]
        %v633 = vld [vmem:[%s4 + $0x258] sm:$0xff]
        %v634 = vld [vmem:[%s4 + $0x260] sm:$0xff]
        %v635 = vld [vmem:[%s4 + $0x268] sm:$0xff]
        %v636 = vld [vmem:[%s4 + $0x270] sm:$0xff]
        %v637 = vld [vmem:[%s4 + $0x278] sm:$0xff]
        %v638 = vld [vmem:[%s4 + $0x280] sm:$0xff]
        %640 = vset.pattern.permute.xlu0 0
        %641 = vperm.xlu0 %640, %v558
        %v642 = vpop.permute.xlu0 %641
        %645 = vset.pattern.permute.xlu0 0
        %646 = vperm.xlu0 %645, %v559
        %v647 = vpop.permute.xlu0 %646
        %650 = vset.pattern.permute.xlu0 0
        %651 = vperm.xlu0 %650, %v560
        %v652 = vpop.permute.xlu0 %651
        %655 = vset.pattern.permute.xlu0 0
        %656 = vperm.xlu0 %655, %v561
        %v657 = vpop.permute.xlu0 %656
        %660 = vset.pattern.permute.xlu0 0
        %661 = vperm.xlu0 %660, %v562
        %v662 = vpop.permute.xlu0 %661
        %665 = vset.pattern.permute.xlu0 0
        %666 = vperm.xlu0 %665, %v563
        %v667 = vpop.permute.xlu0 %666
        %670 = vset.pattern.permute.xlu0 0
        %671 = vperm.xlu0 %670, %v564
        %v672 = vpop.permute.xlu0 %671
        %675 = vset.pattern.permute.xlu0 0
        %676 = vperm.xlu0 %675, %v565
        %v677 = vpop.permute.xlu0 %676
        %680 = vset.pattern.permute.xlu0 0
        %681 = vperm.xlu0 %680, %v566
        %v682 = vpop.permute.xlu0 %681
        %685 = vset.pattern.permute.xlu0 0
        %686 = vperm.xlu0 %685, %v567
        %v687 = vpop.permute.xlu0 %686
        %690 = vset.pattern.permute.xlu0 0
        %691 = vperm.xlu0 %690, %v568
        %v692 = vpop.permute.xlu0 %691
        %695 = vset.pattern.permute.xlu0 0
        %696 = vperm.xlu0 %695, %v569
        %v697 = vpop.permute.xlu0 %696
        %700 = vset.pattern.permute.xlu0 0
        %701 = vperm.xlu0 %700, %v570
        %v702 = vpop.permute.xlu0 %701
        %705 = vset.pattern.permute.xlu0 0
        %706 = vperm.xlu0 %705, %v571
        %v707 = vpop.permute.xlu0 %706
        %710 = vset.pattern.permute.xlu0 0
        %711 = vperm.xlu0 %710, %v572
        %v712 = vpop.permute.xlu0 %711
        %715 = vset.pattern.permute.xlu0 0
        %716 = vperm.xlu0 %715, %v573
        %v717 = vpop.permute.xlu0 %716
        %720 = vset.pattern.permute.xlu0 0
        %721 = vperm.xlu0 %720, %v574
        %v722 = vpop.permute.xlu0 %721
        %725 = vset.pattern.permute.xlu0 0
        %726 = vperm.xlu0 %725, %v575
        %v727 = vpop.permute.xlu0 %726
        %730 = vset.pattern.permute.xlu0 0
        %731 = vperm.xlu0 %730, %v576
        %v732 = vpop.permute.xlu0 %731
        %735 = vset.pattern.permute.xlu0 0
        %736 = vperm.xlu0 %735, %v577
        %v737 = vpop.permute.xlu0 %736
        %740 = vset.pattern.permute.xlu0 0
        %741 = vperm.xlu0 %740, %v578
        %v742 = vpop.permute.xlu0 %741
        %745 = vset.pattern.permute.xlu0 0
        %746 = vperm.xlu0 %745, %v579
        %v747 = vpop.permute.xlu0 %746
        %750 = vset.pattern.permute.xlu0 0
        %751 = vperm.xlu0 %750, %v580
        %v752 = vpop.permute.xlu0 %751
        %755 = vset.pattern.permute.xlu0 0
        %756 = vperm.xlu0 %755, %v581
        %v757 = vpop.permute.xlu0 %756
        %760 = vset.pattern.permute.xlu0 0
        %761 = vperm.xlu0 %760, %v582
        %v762 = vpop.permute.xlu0 %761
        %765 = vset.pattern.permute.xlu0 0
        %766 = vperm.xlu0 %765, %v583
        %v767 = vpop.permute.xlu0 %766
        %770 = vset.pattern.permute.xlu0 0
        %771 = vperm.xlu0 %770, %v584
        %v772 = vpop.permute.xlu0 %771
        %775 = vset.pattern.permute.xlu0 0
        %776 = vperm.xlu0 %775, %v585
        %v777 = vpop.permute.xlu0 %776
        %780 = vset.pattern.permute.xlu0 0
        %781 = vperm.xlu0 %780, %v586
        %v782 = vpop.permute.xlu0 %781
        %785 = vset.pattern.permute.xlu0 0
        %786 = vperm.xlu0 %785, %v587
        %v787 = vpop.permute.xlu0 %786
        %790 = vset.pattern.permute.xlu0 0
        %791 = vperm.xlu0 %790, %v588
        %v792 = vpop.permute.xlu0 %791
        %795 = vset.pattern.permute.xlu0 0
        %796 = vperm.xlu0 %795, %v589
        %v797 = vpop.permute.xlu0 %796
        %800 = vset.pattern.permute.xlu0 0
        %801 = vperm.xlu0 %800, %v590
        %v802 = vpop.permute.xlu0 %801
        %805 = vset.pattern.permute.xlu0 0
        %806 = vperm.xlu0 %805, %v591
        %v807 = vpop.permute.xlu0 %806
        %810 = vset.pattern.permute.xlu0 0
        %811 = vperm.xlu0 %810, %v592
        %v812 = vpop.permute.xlu0 %811
        %815 = vset.pattern.permute.xlu0 0
        %816 = vperm.xlu0 %815, %v593
        %v817 = vpop.permute.xlu0 %816
        %820 = vset.pattern.permute.xlu0 0
        %821 = vperm.xlu0 %820, %v594
        %v822 = vpop.permute.xlu0 %821
        %825 = vset.pattern.permute.xlu0 0
        %826 = vperm.xlu0 %825, %v595
        %v827 = vpop.permute.xlu0 %826
        %830 = vset.pattern.permute.xlu0 0
        %831 = vperm.xlu0 %830, %v596
        %v832 = vpop.permute.xlu0 %831
        %835 = vset.pattern.permute.xlu0 0
        %836 = vperm.xlu0 %835, %v597
        %v837 = vpop.permute.xlu0 %836
        %840 = vset.pattern.permute.xlu0 0
        %841 = vperm.xlu0 %840, %v598
        %v842 = vpop.permute.xlu0 %841
        %845 = vset.pattern.permute.xlu0 0
        %846 = vperm.xlu0 %845, %v599
        %v847 = vpop.permute.xlu0 %846
        %850 = vset.pattern.permute.xlu0 0
        %851 = vperm.xlu0 %850, %v600
        %v852 = vpop.permute.xlu0 %851
        %855 = vset.pattern.permute.xlu0 0
        %856 = vperm.xlu0 %855, %v601
        %v857 = vpop.permute.xlu0 %856
        %860 = vset.pattern.permute.xlu0 0
        %861 = vperm.xlu0 %860, %v602
        %v862 = vpop.permute.xlu0 %861
        %865 = vset.pattern.permute.xlu0 0
        %866 = vperm.xlu0 %865, %v603
        %v867 = vpop.permute.xlu0 %866
        %870 = vset.pattern.permute.xlu0 0
        %871 = vperm.xlu0 %870, %v604
        %v872 = vpop.permute.xlu0 %871
        %875 = vset.pattern.permute.xlu0 0
        %876 = vperm.xlu0 %875, %v605
        %v877 = vpop.permute.xlu0 %876
        %880 = vset.pattern.permute.xlu0 0
        %881 = vperm.xlu0 %880, %v606
        %v882 = vpop.permute.xlu0 %881
        %885 = vset.pattern.permute.xlu0 0
        %886 = vperm.xlu0 %885, %v607
        %v887 = vpop.permute.xlu0 %886
        %890 = vset.pattern.permute.xlu0 0
        %891 = vperm.xlu0 %890, %v608
        %v892 = vpop.permute.xlu0 %891
        %895 = vset.pattern.permute.xlu0 0
        %896 = vperm.xlu0 %895, %v609
        %v897 = vpop.permute.xlu0 %896
        %900 = vset.pattern.permute.xlu0 0
        %901 = vperm.xlu0 %900, %v610
        %v902 = vpop.permute.xlu0 %901
        %905 = vset.pattern.permute.xlu0 0
        %906 = vperm.xlu0 %905, %v611
        %v907 = vpop.permute.xlu0 %906
        %910 = vset.pattern.permute.xlu0 0
        %911 = vperm.xlu0 %910, %v612
        %v912 = vpop.permute.xlu0 %911
        %915 = vset.pattern.permute.xlu0 0
        %916 = vperm.xlu0 %915, %v613
        %v917 = vpop.permute.xlu0 %916
        %920 = vset.pattern.permute.xlu0 0
        %921 = vperm.xlu0 %920, %v614
        %v922 = vpop.permute.xlu0 %921
        %925 = vset.pattern.permute.xlu0 0
        %926 = vperm.xlu0 %925, %v615
        %v927 = vpop.permute.xlu0 %926
        %930 = vset.pattern.permute.xlu0 0
        %931 = vperm.xlu0 %930, %v616
        %v932 = vpop.permute.xlu0 %931
        %935 = vset.pattern.permute.xlu0 0
        %936 = vperm.xlu0 %935, %v617
        %v937 = vpop.permute.xlu0 %936
        %940 = vset.pattern.permute.xlu0 0
        %941 = vperm.xlu0 %940, %v618
        %v942 = vpop.permute.xlu0 %941
        %945 = vset.pattern.permute.xlu0 0
        %946 = vperm.xlu0 %945, %v619
        %v947 = vpop.permute.xlu0 %946
        %950 = vset.pattern.permute.xlu0 0
        %951 = vperm.xlu0 %950, %v620
        %v952 = vpop.permute.xlu0 %951
        %955 = vset.pattern.permute.xlu0 0
        %956 = vperm.xlu0 %955, %v621
        %v957 = vpop.permute.xlu0 %956
        %960 = vset.pattern.permute.xlu0 0
        %961 = vperm.xlu0 %960, %v622
        %v962 = vpop.permute.xlu0 %961
        %965 = vset.pattern.permute.xlu0 0
        %966 = vperm.xlu0 %965, %v623
        %v967 = vpop.permute.xlu0 %966
        %970 = vset.pattern.permute.xlu0 0
        %971 = vperm.xlu0 %970, %v624
        %v972 = vpop.permute.xlu0 %971
        %975 = vset.pattern.permute.xlu0 0
        %976 = vperm.xlu0 %975, %v625
        %v977 = vpop.permute.xlu0 %976
        %980 = vset.pattern.permute.xlu0 0
        %981 = vperm.xlu0 %980, %v626
        %v982 = vpop.permute.xlu0 %981
        %985 = vset.pattern.permute.xlu0 0
        %986 = vperm.xlu0 %985, %v627
        %v987 = vpop.permute.xlu0 %986
        %990 = vset.pattern.permute.xlu0 0
        %991 = vperm.xlu0 %990, %v628
        %v992 = vpop.permute.xlu0 %991
        %995 = vset.pattern.permute.xlu0 0
        %996 = vperm.xlu0 %995, %v629
        %v997 = vpop.permute.xlu0 %996
        %1000 = vset.pattern.permute.xlu0 0
        %1001 = vperm.xlu0 %1000, %v630
        %v1002 = vpop.permute.xlu0 %1001
        %1005 = vset.pattern.permute.xlu0 0
        %1006 = vperm.xlu0 %1005, %v631
        %v1007 = vpop.permute.xlu0 %1006
        %1010 = vset.pattern.permute.xlu0 0
        %1011 = vperm.xlu0 %1010, %v632
        %v1012 = vpop.permute.xlu0 %1011
        %1015 = vset.pattern.permute.xlu0 0
        %1016 = vperm.xlu0 %1015, %v633
        %v1017 = vpop.permute.xlu0 %1016
        %1020 = vset.pattern.permute.xlu0 0
        %1021 = vperm.xlu0 %1020, %v634
        %v1022 = vpop.permute.xlu0 %1021
        %1025 = vset.pattern.permute.xlu0 0
        %1026 = vperm.xlu0 %1025, %v635
        %v1027 = vpop.permute.xlu0 %1026
        %1030 = vset.pattern.permute.xlu0 0
        %1031 = vperm.xlu0 %1030, %v636
        %v1032 = vpop.permute.xlu0 %1031
        %1035 = vset.pattern.permute.xlu0 0
        %1036 = vperm.xlu0 %1035, %v637
        %v1037 = vpop.permute.xlu0 %1036
        %1040 = vset.pattern.permute.xlu0 0
        %1041 = vperm.xlu0 %1040, %v638
        %v1042 = vpop.permute.xlu0 %1041
        %v1045 = vsel %vm339, %v477, 0
        %v1048 = vsel %vm339, %v478, 0
        %v1051 = vsel %vm339, %v479, 0
        %v1054 = vsel %vm339, %v480, 0
        %v1057 = vsel %vm339, %v481, 0
        %v1060 = vsel %vm339, %v482, 0
        %v1063 = vsel %vm339, %v483, 0
        %v1066 = vsel %vm339, %v484, 0
        %v1069 = vsel %vm339, %v485, 0
        %v1072 = vsel %vm339, %v486, 0
        %v1075 = vsel %vm339, %v487, 0
        %v1078 = vsel %vm339, %v488, 0
        %v1081 = vsel %vm339, %v489, 0
        %v1084 = vsel %vm339, %v490, 0
        %v1087 = vsel %vm339, %v491, 0
        %v1090 = vsel %vm339, %v492, 0
        %v1093 = vsel %vm339, %v493, 0
        %v1096 = vsel %vm339, %v494, 0
        %v1099 = vsel %vm339, %v495, 0
        %v1102 = vsel %vm339, %v496, 0
        %v1105 = vsel %vm339, %v497, 0
        %v1108 = vsel %vm339, %v498, 0
        %v1111 = vsel %vm339, %v499, 0
        %v1114 = vsel %vm339, %v500, 0
        %v1117 = vsel %vm339, %v501, 0
        %v1120 = vsel %vm339, %v502, 0
        %v1123 = vsel %vm339, %v503, 0
        %v1126 = vsel %vm339, %v504, 0
        %v1129 = vsel %vm339, %v505, 0
        %v1132 = vsel %vm339, %v506, 0
        %v1135 = vsel %vm339, %v507, 0
        %v1138 = vsel %vm339, %v508, 0
        %v1141 = vsel %vm339, %v509, 0
        %v1144 = vsel %vm339, %v510, 0
        %v1147 = vsel %vm339, %v511, 0
        %v1150 = vsel %vm339, %v512, 0
        %v1153 = vsel %vm339, %v513, 0
        %v1156 = vsel %vm339, %v514, 0
        %v1159 = vsel %vm339, %v515, 0
        %v1162 = vsel %vm339, %v516, 0
        %v1165 = vsel %vm339, %v517, 0
        %v1168 = vsel %vm339, %v518, 0
        %v1171 = vsel %vm339, %v519, 0
        %v1174 = vsel %vm339, %v520, 0
        %v1177 = vsel %vm339, %v521, 0
        %v1180 = vsel %vm339, %v522, 0
        %v1183 = vsel %vm339, %v523, 0
        %v1186 = vsel %vm339, %v524, 0
        %v1189 = vsel %vm339, %v525, 0
        %v1192 = vsel %vm339, %v526, 0
        %v1195 = vsel %vm339, %v527, 0
        %v1198 = vsel %vm339, %v528, 0
        %v1201 = vsel %vm339, %v529, 0
        %v1204 = vsel %vm339, %v530, 0
        %v1207 = vsel %vm339, %v531, 0
        %v1210 = vsel %vm339, %v532, 0
        %v1213 = vsel %vm339, %v533, 0
        %v1216 = vsel %vm339, %v534, 0
        %v1219 = vsel %vm339, %v535, 0
        %v1222 = vsel %vm339, %v536, 0
        %v1225 = vsel %vm339, %v537, 0
        %v1228 = vsel %vm339, %v538, 0
        %v1231 = vsel %vm339, %v539, 0
        %v1234 = vsel %vm339, %v540, 0
        %v1237 = vsel %vm339, %v541, 0
        %v1240 = vsel %vm339, %v542, 0
        %v1243 = vsel %vm339, %v543, 0
        %v1246 = vsel %vm339, %v544, 0
        %v1249 = vsel %vm339, %v545, 0
        %v1252 = vsel %vm339, %v546, 0
        %v1255 = vsel %vm339, %v547, 0
        %v1258 = vsel %vm339, %v548, 0
        %v1261 = vsel %vm339, %v549, 0
        %v1264 = vsel %vm339, %v550, 0
        %v1267 = vsel %vm339, %v551, 0
        %v1270 = vsel %vm339, %v552, 0
        %v1273 = vsel %vm339, %v553, 0
        %v1276 = vsel %vm339, %v554, 0
        %v1279 = vsel %vm339, %v555, 0
        %v1282 = vsel %vm339, %v556, 0
        %v1285 = vsel %vm339, %v557, 0
        %1287 = vmatprep.subr.mxu0 0.0
        %1288 = vmatpush1.msra.mxu0 0.0
        %1289 = vmatprep.subr.mxu0 0.0
        %1290 = vmatpush1.msra.mxu0 0.0
        %1291 = vmatprep.subr.mxu0 0.0
        %1292 = vmatpush1.msra.mxu0 0.0
        %1293 = vmatprep.subr.mxu0 0.0
        %1294 = vmatpush1.msra.mxu0 0.0
        %1295 = vmatprep.subr.mxu0 0.0
        %1296 = vmatpush1.msra.mxu0 0.0
        %1297 = vmatprep.subr.mxu0 0.0
        %1298 = vmatpush1.msra.mxu0 0.0
        %1299 = vmatprep.subr.mxu0 0.0
        %1300 = vmatpush1.msra.mxu0 0.0
        %1301 = vmatprep.subr.mxu0 0.0
        %1302 = vmatpush1.msra.mxu0 0.0
        %1303 = vmatprep.subr.mxu0 0.0
        %1304 = vmatpush1.msra.mxu0 %v476
        %1305 = vmatprep.subr.mxu0 0.0
        %1306 = vmatpush1.msra.mxu0 %v475
        %1307 = vmatprep.subr.mxu0 0.0
        %1308 = vmatpush1.msra.mxu0 %v474
        %1309 = vmatprep.subr.mxu0 0.0
        %1310 = vmatpush1.msra.mxu0 %v473
        %1311 = vmatprep.subr.mxu0 0.0
        %1312 = vmatpush1.msra.mxu0 %v472
        %1313 = vmatprep.subr.mxu0 0.0
        %1314 = vmatpush1.msra.mxu0 %v471
        %1315 = vmatprep.subr.mxu0 0.0
        %1316 = vmatpush1.msra.mxu0 %v470
        %1317 = vmatprep.subr.mxu0 0.0
        %1318 = vmatpush1.msra.mxu0 %v469
        %1319 = vmatprep.subr.mxu0 0.0
        %1320 = vmatpush2.msra.mxu0 0.0
        %1321 = vmatprep.subr.mxu0 0.0
        %1322 = vmatpush2.msra.mxu0 0.0
        %1323 = vmatprep.subr.mxu0 0.0
        %1324 = vmatpush2.msra.mxu0 0.0
        %1325 = vmatprep.subr.mxu0 0.0
        %1326 = vmatpush2.msra.mxu0 0.0
        %1327 = vmatprep.subr.mxu0 0.0
        %1328 = vmatpush2.msra.mxu0 0.0
        %1329 = vmatprep.subr.mxu0 0.0
        %1330 = vmatpush2.msra.mxu0 0.0
        %1331 = vmatprep.subr.mxu0 0.0
        %1332 = vmatpush2.msra.mxu0 0.0
        %1333 = vmatprep.subr.mxu0 0.0
        %1334 = vmatpush2.msra.mxu0 0.0
        %1335 = vmatprep.subr.mxu0 0.0
        %1336 = vmatpush2.msra.mxu0 0.0
        %1337 = vmatprep.subr.mxu0 0.0
        %1338 = vmatpush2.msra.mxu0 0.0
        %1339 = vmatprep.subr.mxu0 0.0
        %1340 = vmatpush2.msra.mxu0 0.0
        %1341 = vmatprep.subr.mxu0 0.0
        %1342 = vmatpush2.msra.mxu0 0.0
        %1343 = vmatprep.subr.mxu0 0.0
        %1344 = vmatpush2.msra.mxu0 0.0
        %1345 = vmatprep.subr.mxu0 0.0
        %1346 = vmatpush2.msra.mxu0 0.0
        %1347 = vmatprep.subr.mxu0 0.0
        %1348 = vmatpush2.msra.mxu0 0.0
        %1349 = vmatprep.subr.mxu0 0.0
        %1350 = vmatpush2.msra.mxu0 0.0
        %1351 = vmatprep.mubr.f32.mxu0 0.0
        %1352 = vmatmul.mubr.f32.gmra.mxu0 %v1045
        %v1353 = vpop.f32.mrf.mxu0
        %v1354 = vadd.f32 %v642, %v1353
        %v1355 = vpop.f32.mrf.mxu0
        %1356 = vmatprep.mubr.f32.mxu0 0.0
        %1357 = vmatmul.mubr.f32.gmra.mxu0 %v1048
        %v1358 = vpop.f32.mrf.mxu0
        %v1359 = vadd.f32 %v647, %v1358
        %v1360 = vpop.f32.mrf.mxu0
        %1361 = vmatprep.mubr.f32.mxu0 0.0
        %1362 = vmatmul.mubr.f32.gmra.mxu0 %v1051
        %v1363 = vpop.f32.mrf.mxu0
        %v1364 = vadd.f32 %v652, %v1363
        %v1365 = vpop.f32.mrf.mxu0
        %1366 = vmatprep.mubr.f32.mxu0 0.0
        %1367 = vmatmul.mubr.f32.gmra.mxu0 %v1054
        %v1368 = vpop.f32.mrf.mxu0
        %v1369 = vadd.f32 %v657, %v1368
        %v1370 = vpop.f32.mrf.mxu0
        %1371 = vmatprep.mubr.f32.mxu0 0.0
        %1372 = vmatmul.mubr.f32.gmra.mxu0 %v1057
        %v1373 = vpop.f32.mrf.mxu0
        %v1374 = vadd.f32 %v662, %v1373
        %v1375 = vpop.f32.mrf.mxu0
        %1376 = vmatprep.mubr.f32.mxu0 0.0
        %1377 = vmatmul.mubr.f32.gmra.mxu0 %v1060
        %v1378 = vpop.f32.mrf.mxu0
        %v1379 = vadd.f32 %v667, %v1378
        %v1380 = vpop.f32.mrf.mxu0
        %1381 = vmatprep.mubr.f32.mxu0 0.0
        %1382 = vmatmul.mubr.f32.gmra.mxu0 %v1063
        %v1383 = vpop.f32.mrf.mxu0
        %v1384 = vadd.f32 %v672, %v1383
        %v1385 = vpop.f32.mrf.mxu0
        %1386 = vmatprep.mubr.f32.mxu0 0.0
        %1387 = vmatmul.mubr.f32.gmra.mxu0 %v1066
        %v1388 = vpop.f32.mrf.mxu0
        %v1389 = vadd.f32 %v677, %v1388
        %v1390 = vpop.f32.mrf.mxu0
        %1391 = vmatprep.mubr.f32.mxu0 0.0
        %1392 = vmatmul.mubr.f32.gmra.mxu0 %v1069
        %v1393 = vpop.f32.mrf.mxu0
        %v1394 = vadd.f32 %v682, %v1393
        %v1395 = vpop.f32.mrf.mxu0
        %1396 = vmatprep.mubr.f32.mxu0 0.0
        %1397 = vmatmul.mubr.f32.gmra.mxu0 %v1072
        %v1398 = vpop.f32.mrf.mxu0
        %v1399 = vadd.f32 %v687, %v1398
        %v1400 = vpop.f32.mrf.mxu0
        %1401 = vmatprep.mubr.f32.mxu0 0.0
        %1402 = vmatmul.mubr.f32.gmra.mxu0 %v1075
        %v1403 = vpop.f32.mrf.mxu0
        %v1404 = vadd.f32 %v692, %v1403
        %v1405 = vpop.f32.mrf.mxu0
        %1406 = vmatprep.mubr.f32.mxu0 0.0
        %1407 = vmatmul.mubr.f32.gmra.mxu0 %v1078
        %v1408 = vpop.f32.mrf.mxu0
        %v1409 = vadd.f32 %v697, %v1408
        %v1410 = vpop.f32.mrf.mxu0
        %1411 = vmatprep.mubr.f32.mxu0 0.0
        %1412 = vmatmul.mubr.f32.gmra.mxu0 %v1081
        %v1413 = vpop.f32.mrf.mxu0
        %v1414 = vadd.f32 %v702, %v1413
        %v1415 = vpop.f32.mrf.mxu0
        %1416 = vmatprep.mubr.f32.mxu0 0.0
        %1417 = vmatmul.mubr.f32.gmra.mxu0 %v1084
        %v1418 = vpop.f32.mrf.mxu0
        %v1419 = vadd.f32 %v707, %v1418
        %v1420 = vpop.f32.mrf.mxu0
        %1421 = vmatprep.mubr.f32.mxu0 0.0
        %1422 = vmatmul.mubr.f32.gmra.mxu0 %v1087
        %v1423 = vpop.f32.mrf.mxu0
        %v1424 = vadd.f32 %v712, %v1423
        %v1425 = vpop.f32.mrf.mxu0
        %1426 = vmatprep.mubr.f32.mxu0 0.0
        %1427 = vmatmul.mubr.f32.gmra.mxu0 %v1090
        %v1428 = vpop.f32.mrf.mxu0
        %v1429 = vadd.f32 %v717, %v1428
        %v1430 = vpop.f32.mrf.mxu0
        %1431 = vmatprep.mubr.f32.mxu0 0.0
        %1432 = vmatmul.mubr.f32.gmra.mxu0 %v1093
        %v1433 = vpop.f32.mrf.mxu0
        %v1434 = vadd.f32 %v722, %v1433
        %v1435 = vpop.f32.mrf.mxu0
        %1436 = vmatprep.mubr.f32.mxu0 0.0
        %1437 = vmatmul.mubr.f32.gmra.mxu0 %v1096
        %v1438 = vpop.f32.mrf.mxu0
        %v1439 = vadd.f32 %v727, %v1438
        %v1440 = vpop.f32.mrf.mxu0
        %1441 = vmatprep.mubr.f32.mxu0 0.0
        %1442 = vmatmul.mubr.f32.gmra.mxu0 %v1099
        %v1443 = vpop.f32.mrf.mxu0
        %v1444 = vadd.f32 %v732, %v1443
        %v1445 = vpop.f32.mrf.mxu0
        %1446 = vmatprep.mubr.f32.mxu0 0.0
        %1447 = vmatmul.mubr.f32.gmra.mxu0 %v1102
        %v1448 = vpop.f32.mrf.mxu0
        %v1449 = vadd.f32 %v737, %v1448
        %v1450 = vpop.f32.mrf.mxu0
        %1451 = vmatprep.mubr.f32.mxu0 0.0
        %1452 = vmatmul.mubr.f32.gmra.mxu0 %v1105
        %v1453 = vpop.f32.mrf.mxu0
        %v1454 = vadd.f32 %v742, %v1453
        %v1455 = vpop.f32.mrf.mxu0
        %1456 = vmatprep.mubr.f32.mxu0 0.0
        %1457 = vmatmul.mubr.f32.gmra.mxu0 %v1108
        %v1458 = vpop.f32.mrf.mxu0
        %v1459 = vadd.f32 %v747, %v1458
        %v1460 = vpop.f32.mrf.mxu0
        %1461 = vmatprep.mubr.f32.mxu0 0.0
        %1462 = vmatmul.mubr.f32.gmra.mxu0 %v1111
        %v1463 = vpop.f32.mrf.mxu0
        %v1464 = vadd.f32 %v752, %v1463
        %v1465 = vpop.f32.mrf.mxu0
        %1466 = vmatprep.mubr.f32.mxu0 0.0
        %1467 = vmatmul.mubr.f32.gmra.mxu0 %v1114
        %v1468 = vpop.f32.mrf.mxu0
        %v1469 = vadd.f32 %v757, %v1468
        %v1470 = vpop.f32.mrf.mxu0
        %1471 = vmatprep.mubr.f32.mxu0 0.0
        %1472 = vmatmul.mubr.f32.gmra.mxu0 %v1117
        %v1473 = vpop.f32.mrf.mxu0
        %v1474 = vadd.f32 %v762, %v1473
        %v1475 = vpop.f32.mrf.mxu0
        %1476 = vmatprep.mubr.f32.mxu0 0.0
        %1477 = vmatmul.mubr.f32.gmra.mxu0 %v1120
        %v1478 = vpop.f32.mrf.mxu0
        %v1479 = vadd.f32 %v767, %v1478
        %v1480 = vpop.f32.mrf.mxu0
        %1481 = vmatprep.mubr.f32.mxu0 0.0
        %1482 = vmatmul.mubr.f32.gmra.mxu0 %v1123
        %v1483 = vpop.f32.mrf.mxu0
        %v1484 = vadd.f32 %v772, %v1483
        %v1485 = vpop.f32.mrf.mxu0
        %1486 = vmatprep.mubr.f32.mxu0 0.0
        %1487 = vmatmul.mubr.f32.gmra.mxu0 %v1126
        %v1488 = vpop.f32.mrf.mxu0
        %v1489 = vadd.f32 %v777, %v1488
        %v1490 = vpop.f32.mrf.mxu0
        %1491 = vmatprep.mubr.f32.mxu0 0.0
        %1492 = vmatmul.mubr.f32.gmra.mxu0 %v1129
        %v1493 = vpop.f32.mrf.mxu0
        %v1494 = vadd.f32 %v782, %v1493
        %v1495 = vpop.f32.mrf.mxu0
        %1496 = vmatprep.mubr.f32.mxu0 0.0
        %1497 = vmatmul.mubr.f32.gmra.mxu0 %v1132
        %v1498 = vpop.f32.mrf.mxu0
        %v1499 = vadd.f32 %v787, %v1498
        %v1500 = vpop.f32.mrf.mxu0
        %1501 = vmatprep.mubr.f32.mxu0 0.0
        %1502 = vmatmul.mubr.f32.gmra.mxu0 %v1135
        %v1503 = vpop.f32.mrf.mxu0
        %v1504 = vadd.f32 %v792, %v1503
        %v1505 = vpop.f32.mrf.mxu0
        %1506 = vmatprep.mubr.f32.mxu0 0.0
        %1507 = vmatmul.mubr.f32.gmra.mxu0 %v1138
        %v1508 = vpop.f32.mrf.mxu0
        %v1509 = vadd.f32 %v797, %v1508
        %v1510 = vpop.f32.mrf.mxu0
        %1511 = vmatprep.mubr.f32.mxu0 0.0
        %1512 = vmatmul.mubr.f32.gmra.mxu0 %v1141
        %v1513 = vpop.f32.mrf.mxu0
        %v1514 = vadd.f32 %v802, %v1513
        %v1515 = vpop.f32.mrf.mxu0
        %1516 = vmatprep.mubr.f32.mxu0 0.0
        %1517 = vmatmul.mubr.f32.gmra.mxu0 %v1144
        %v1518 = vpop.f32.mrf.mxu0
        %v1519 = vadd.f32 %v807, %v1518
        %v1520 = vpop.f32.mrf.mxu0
        %1521 = vmatprep.mubr.f32.mxu0 0.0
        %1522 = vmatmul.mubr.f32.gmra.mxu0 %v1147
        %v1523 = vpop.f32.mrf.mxu0
        %v1524 = vadd.f32 %v812, %v1523
        %v1525 = vpop.f32.mrf.mxu0
        %1526 = vmatprep.mubr.f32.mxu0 0.0
        %1527 = vmatmul.mubr.f32.gmra.mxu0 %v1150
        %v1528 = vpop.f32.mrf.mxu0
        %v1529 = vadd.f32 %v817, %v1528
        %v1530 = vpop.f32.mrf.mxu0
        %1531 = vmatprep.mubr.f32.mxu0 0.0
        %1532 = vmatmul.mubr.f32.gmra.mxu0 %v1153
        %v1533 = vpop.f32.mrf.mxu0
        %v1534 = vadd.f32 %v822, %v1533
        %v1535 = vpop.f32.mrf.mxu0
        %1536 = vmatprep.mubr.f32.mxu0 0.0
        %1537 = vmatmul.mubr.f32.gmra.mxu0 %v1156
        %v1538 = vpop.f32.mrf.mxu0
        %v1539 = vadd.f32 %v827, %v1538
        %v1540 = vpop.f32.mrf.mxu0
        %1541 = vmatprep.mubr.f32.mxu0 0.0
        %1542 = vmatmul.mubr.f32.gmra.mxu0 %v1159
        %v1543 = vpop.f32.mrf.mxu0
        %v1544 = vadd.f32 %v832, %v1543
        %v1545 = vpop.f32.mrf.mxu0
        %1546 = vmatprep.mubr.f32.mxu0 0.0
        %1547 = vmatmul.mubr.f32.gmra.mxu0 %v1162
        %v1548 = vpop.f32.mrf.mxu0
        %v1549 = vadd.f32 %v837, %v1548
        %v1550 = vpop.f32.mrf.mxu0
        %1551 = vmatprep.mubr.f32.mxu0 0.0
        %1552 = vmatmul.mubr.f32.gmra.mxu0 %v1165
        %v1553 = vpop.f32.mrf.mxu0
        %v1554 = vadd.f32 %v842, %v1553
        %v1555 = vpop.f32.mrf.mxu0
        %1556 = vmatprep.mubr.f32.mxu0 0.0
        %1557 = vmatmul.mubr.f32.gmra.mxu0 %v1168
        %v1558 = vpop.f32.mrf.mxu0
        %v1559 = vadd.f32 %v847, %v1558
        %v1560 = vpop.f32.mrf.mxu0
        %1561 = vmatprep.mubr.f32.mxu0 0.0
        %1562 = vmatmul.mubr.f32.gmra.mxu0 %v1171
        %v1563 = vpop.f32.mrf.mxu0
        %v1564 = vadd.f32 %v852, %v1563
        %v1565 = vpop.f32.mrf.mxu0
        %1566 = vmatprep.mubr.f32.mxu0 0.0
        %1567 = vmatmul.mubr.f32.gmra.mxu0 %v1174
        %v1568 = vpop.f32.mrf.mxu0
        %v1569 = vadd.f32 %v857, %v1568
        %v1570 = vpop.f32.mrf.mxu0
        %1571 = vmatprep.mubr.f32.mxu0 0.0
        %1572 = vmatmul.mubr.f32.gmra.mxu0 %v1177
        %v1573 = vpop.f32.mrf.mxu0
        %v1574 = vadd.f32 %v862, %v1573
        %v1575 = vpop.f32.mrf.mxu0
        %1576 = vmatprep.mubr.f32.mxu0 0.0
        %1577 = vmatmul.mubr.f32.gmra.mxu0 %v1180
        %v1578 = vpop.f32.mrf.mxu0
        %v1579 = vadd.f32 %v867, %v1578
        %v1580 = vpop.f32.mrf.mxu0
        %1581 = vmatprep.mubr.f32.mxu0 0.0
        %1582 = vmatmul.mubr.f32.gmra.mxu0 %v1183
        %v1583 = vpop.f32.mrf.mxu0
        %v1584 = vadd.f32 %v872, %v1583
        %v1585 = vpop.f32.mrf.mxu0
        %1586 = vmatprep.mubr.f32.mxu0 0.0
        %1587 = vmatmul.mubr.f32.gmra.mxu0 %v1186
        %v1588 = vpop.f32.mrf.mxu0
        %v1589 = vadd.f32 %v877, %v1588
        %v1590 = vpop.f32.mrf.mxu0
        %1591 = vmatprep.mubr.f32.mxu0 0.0
        %1592 = vmatmul.mubr.f32.gmra.mxu0 %v1189
        %v1593 = vpop.f32.mrf.mxu0
        %v1594 = vadd.f32 %v882, %v1593
        %v1595 = vpop.f32.mrf.mxu0
        %1596 = vmatprep.mubr.f32.mxu0 0.0
        %1597 = vmatmul.mubr.f32.gmra.mxu0 %v1192
        %v1598 = vpop.f32.mrf.mxu0
        %v1599 = vadd.f32 %v887, %v1598
        %v1600 = vpop.f32.mrf.mxu0
        %1601 = vmatprep.mubr.f32.mxu0 0.0
        %1602 = vmatmul.mubr.f32.gmra.mxu0 %v1195
        %v1603 = vpop.f32.mrf.mxu0
        %v1604 = vadd.f32 %v892, %v1603
        %v1605 = vpop.f32.mrf.mxu0
        %1606 = vmatprep.mubr.f32.mxu0 0.0
        %1607 = vmatmul.mubr.f32.gmra.mxu0 %v1198
        %v1608 = vpop.f32.mrf.mxu0
        %v1609 = vadd.f32 %v897, %v1608
        %v1610 = vpop.f32.mrf.mxu0
        %1611 = vmatprep.mubr.f32.mxu0 0.0
        %1612 = vmatmul.mubr.f32.gmra.mxu0 %v1201
        %v1613 = vpop.f32.mrf.mxu0
        %v1614 = vadd.f32 %v902, %v1613
        %v1615 = vpop.f32.mrf.mxu0
        %1616 = vmatprep.mubr.f32.mxu0 0.0
        %1617 = vmatmul.mubr.f32.gmra.mxu0 %v1204
        %v1618 = vpop.f32.mrf.mxu0
        %v1619 = vadd.f32 %v907, %v1618
        %v1620 = vpop.f32.mrf.mxu0
        %1621 = vmatprep.mubr.f32.mxu0 0.0
        %1622 = vmatmul.mubr.f32.gmra.mxu0 %v1207
        %v1623 = vpop.f32.mrf.mxu0
        %v1624 = vadd.f32 %v912, %v1623
        %v1625 = vpop.f32.mrf.mxu0
        %1626 = vmatprep.mubr.f32.mxu0 0.0
        %1627 = vmatmul.mubr.f32.gmra.mxu0 %v1210
        %v1628 = vpop.f32.mrf.mxu0
        %v1629 = vadd.f32 %v917, %v1628
        %v1630 = vpop.f32.mrf.mxu0
        %1631 = vmatprep.mubr.f32.mxu0 0.0
        %1632 = vmatmul.mubr.f32.gmra.mxu0 %v1213
        %v1633 = vpop.f32.mrf.mxu0
        %v1634 = vadd.f32 %v922, %v1633
        %v1635 = vpop.f32.mrf.mxu0
        %1636 = vmatprep.mubr.f32.mxu0 0.0
        %1637 = vmatmul.mubr.f32.gmra.mxu0 %v1216
        %v1638 = vpop.f32.mrf.mxu0
        %v1639 = vadd.f32 %v927, %v1638
        %v1640 = vpop.f32.mrf.mxu0
        %1641 = vmatprep.mubr.f32.mxu0 0.0
        %1642 = vmatmul.mubr.f32.gmra.mxu0 %v1219
        %v1643 = vpop.f32.mrf.mxu0
        %v1644 = vadd.f32 %v932, %v1643
        %v1645 = vpop.f32.mrf.mxu0
        %1646 = vmatprep.mubr.f32.mxu0 0.0
        %1647 = vmatmul.mubr.f32.gmra.mxu0 %v1222
        %v1648 = vpop.f32.mrf.mxu0
        %v1649 = vadd.f32 %v937, %v1648
        %v1650 = vpop.f32.mrf.mxu0
        %1651 = vmatprep.mubr.f32.mxu0 0.0
        %1652 = vmatmul.mubr.f32.gmra.mxu0 %v1225
        %v1653 = vpop.f32.mrf.mxu0
        %v1654 = vadd.f32 %v942, %v1653
        %v1655 = vpop.f32.mrf.mxu0
        %1656 = vmatprep.mubr.f32.mxu0 0.0
        %1657 = vmatmul.mubr.f32.gmra.mxu0 %v1228
        %v1658 = vpop.f32.mrf.mxu0
        %v1659 = vadd.f32 %v947, %v1658
        %v1660 = vpop.f32.mrf.mxu0
        %1661 = vmatprep.mubr.f32.mxu0 0.0
        %1662 = vmatmul.mubr.f32.gmra.mxu0 %v1231
        %v1663 = vpop.f32.mrf.mxu0
        %v1664 = vadd.f32 %v952, %v1663
        %v1665 = vpop.f32.mrf.mxu0
        %1666 = vmatprep.mubr.f32.mxu0 0.0
        %1667 = vmatmul.mubr.f32.gmra.mxu0 %v1234
        %v1668 = vpop.f32.mrf.mxu0
        %v1669 = vadd.f32 %v957, %v1668
        %v1670 = vpop.f32.mrf.mxu0
        %1671 = vmatprep.mubr.f32.mxu0 0.0
        %1672 = vmatmul.mubr.f32.gmra.mxu0 %v1237
        %v1673 = vpop.f32.mrf.mxu0
        %v1674 = vadd.f32 %v962, %v1673
        %v1675 = vpop.f32.mrf.mxu0
        %1676 = vmatprep.mubr.f32.mxu0 0.0
        %1677 = vmatmul.mubr.f32.gmra.mxu0 %v1240
        %v1678 = vpop.f32.mrf.mxu0
        %v1679 = vadd.f32 %v967, %v1678
        %v1680 = vpop.f32.mrf.mxu0
        %1681 = vmatprep.mubr.f32.mxu0 0.0
        %1682 = vmatmul.mubr.f32.gmra.mxu0 %v1243
        %v1683 = vpop.f32.mrf.mxu0
        %v1684 = vadd.f32 %v972, %v1683
        %v1685 = vpop.f32.mrf.mxu0
        %1686 = vmatprep.mubr.f32.mxu0 0.0
        %1687 = vmatmul.mubr.f32.gmra.mxu0 %v1246
        %v1688 = vpop.f32.mrf.mxu0
        %v1689 = vadd.f32 %v977, %v1688
        %v1690 = vpop.f32.mrf.mxu0
        %1691 = vmatprep.mubr.f32.mxu0 0.0
        %1692 = vmatmul.mubr.f32.gmra.mxu0 %v1249
        %v1693 = vpop.f32.mrf.mxu0
        %v1694 = vadd.f32 %v982, %v1693
        %v1695 = vpop.f32.mrf.mxu0
        %1696 = vmatprep.mubr.f32.mxu0 0.0
        %1697 = vmatmul.mubr.f32.gmra.mxu0 %v1252
        %v1698 = vpop.f32.mrf.mxu0
        %v1699 = vadd.f32 %v987, %v1698
        %v1700 = vpop.f32.mrf.mxu0
        %1701 = vmatprep.mubr.f32.mxu0 0.0
        %1702 = vmatmul.mubr.f32.gmra.mxu0 %v1255
        %v1703 = vpop.f32.mrf.mxu0
        %v1704 = vadd.f32 %v992, %v1703
        %v1705 = vpop.f32.mrf.mxu0
        %1706 = vmatprep.mubr.f32.mxu0 0.0
        %1707 = vmatmul.mubr.f32.gmra.mxu0 %v1258
        %v1708 = vpop.f32.mrf.mxu0
        %v1709 = vadd.f32 %v997, %v1708
        %v1710 = vpop.f32.mrf.mxu0
        %1711 = vmatprep.mubr.f32.mxu0 0.0
        %1712 = vmatmul.mubr.f32.gmra.mxu0 %v1261
        %v1713 = vpop.f32.mrf.mxu0
        %v1714 = vadd.f32 %v1002, %v1713
        %v1715 = vpop.f32.mrf.mxu0
        %1716 = vmatprep.mubr.f32.mxu0 0.0
        %1717 = vmatmul.mubr.f32.gmra.mxu0 %v1264
        %v1718 = vpop.f32.mrf.mxu0
        %v1719 = vadd.f32 %v1007, %v1718
        %v1720 = vpop.f32.mrf.mxu0
        %1721 = vmatprep.mubr.f32.mxu0 0.0
        %1722 = vmatmul.mubr.f32.gmra.mxu0 %v1267
        %v1723 = vpop.f32.mrf.mxu0
        %v1724 = vadd.f32 %v1012, %v1723
        %v1725 = vpop.f32.mrf.mxu0
        %1726 = vmatprep.mubr.f32.mxu0 0.0
        %1727 = vmatmul.mubr.f32.gmra.mxu0 %v1270
        %v1728 = vpop.f32.mrf.mxu0
        %v1729 = vadd.f32 %v1017, %v1728
        %v1730 = vpop.f32.mrf.mxu0
        %1731 = vmatprep.mubr.f32.mxu0 0.0
        %1732 = vmatmul.mubr.f32.gmra.mxu0 %v1273
        %v1733 = vpop.f32.mrf.mxu0
        %v1734 = vadd.f32 %v1022, %v1733
        %v1735 = vpop.f32.mrf.mxu0
        %1736 = vmatprep.mubr.f32.mxu0 0.0
        %1737 = vmatmul.mubr.f32.gmra.mxu0 %v1276
        %v1738 = vpop.f32.mrf.mxu0
        %v1739 = vadd.f32 %v1027, %v1738
        %v1740 = vpop.f32.mrf.mxu0
        %1741 = vmatprep.mubr.f32.mxu0 0.0
        %1742 = vmatmul.mubr.f32.gmra.mxu0 %v1279
        %v1743 = vpop.f32.mrf.mxu0
        %v1744 = vadd.f32 %v1032, %v1743
        %v1745 = vpop.f32.mrf.mxu0
        %1746 = vmatprep.mubr.f32.mxu0 0.0
        %1747 = vmatmul.mubr.f32.gmra.mxu0 %v1282
        %v1748 = vpop.f32.mrf.mxu0
        %v1749 = vadd.f32 %v1037, %v1748
        %v1750 = vpop.f32.mrf.mxu0
        %1751 = vmatprep.mubr.f32.mxu0 0.0
        %1752 = vmatmul.mubr.f32.gmra.mxu0 %v1285
        %v1753 = vpop.f32.mrf.mxu0
        %v1754 = vadd.f32 %v1042, %v1753
        %v1755 = vpop.f32.mrf.mxu0
        %1756 = vdwg.mxu0
        %1757 = vst [vmem:[%s274] sm:$0xff] %v1354
        %1758 = vst [vmem:[%s274 + $0x8] sm:$0xff] %v1359
        %1759 = vst [vmem:[%s274 + $0x10] sm:$0xff] %v1364
        %1760 = vst [vmem:[%s274 + $0x18] sm:$0xff] %v1369
        %1761 = vst [vmem:[%s274 + $0x20] sm:$0xff] %v1374
        %1762 = vst [vmem:[%s274 + $0x28] sm:$0xff] %v1379
        %1763 = vst [vmem:[%s274 + $0x30] sm:$0xff] %v1384
        %1764 = vst [vmem:[%s274 + $0x38] sm:$0xff] %v1389
        %1765 = vst [vmem:[%s274 + $0x40] sm:$0xff] %v1394
        %1766 = vst [vmem:[%s274 + $0x48] sm:$0xff] %v1399
        %1767 = vst [vmem:[%s274 + $0x50] sm:$0xff] %v1404
        %1768 = vst [vmem:[%s274 + $0x58] sm:$0xff] %v1409
        %1769 = vst [vmem:[%s274 + $0x60] sm:$0xff] %v1414
        %1770 = vst [vmem:[%s274 + $0x68] sm:$0xff] %v1419
        %1771 = vst [vmem:[%s274 + $0x70] sm:$0xff] %v1424
        %1772 = vst [vmem:[%s274 + $0x78] sm:$0xff] %v1429
        %1773 = vst [vmem:[%s274 + $0x80] sm:$0xff] %v1434
        %1774 = vst [vmem:[%s274 + $0x88] sm:$0xff] %v1439
        %1775 = vst [vmem:[%s274 + $0x90] sm:$0xff] %v1444
        %1776 = vst [vmem:[%s274 + $0x98] sm:$0xff] %v1449
        %1777 = vst [vmem:[%s274 + $0xa0] sm:$0xff] %v1454
        %1778 = vst [vmem:[%s274 + $0xa8] sm:$0xff] %v1459
        %1779 = vst [vmem:[%s274 + $0xb0] sm:$0xff] %v1464
        %1780 = vst [vmem:[%s274 + $0xb8] sm:$0xff] %v1469
        %1781 = vst [vmem:[%s274 + $0xc0] sm:$0xff] %v1474
        %1782 = vst [vmem:[%s274 + $0xc8] sm:$0xff] %v1479
        %1783 = vst [vmem:[%s274 + $0xd0] sm:$0xff] %v1484
        %1784 = vst [vmem:[%s274 + $0xd8] sm:$0xff] %v1489
        %1785 = vst [vmem:[%s274 + $0xe0] sm:$0xff] %v1494
        %1786 = vst [vmem:[%s274 + $0xe8] sm:$0xff] %v1499
        %1787 = vst [vmem:[%s274 + $0xf0] sm:$0xff] %v1504
        %1788 = vst [vmem:[%s274 + $0xf8] sm:$0xff] %v1509
        %1789 = vst [vmem:[%s274 + $0x100] sm:$0xff] %v1514
        %1790 = vst [vmem:[%s274 + $0x108] sm:$0xff] %v1519
        %1791 = vst [vmem:[%s274 + $0x110] sm:$0xff] %v1524
        %1792 = vst [vmem:[%s274 + $0x118] sm:$0xff] %v1529
        %1793 = vst [vmem:[%s274 + $0x120] sm:$0xff] %v1534
        %1794 = vst [vmem:[%s274 + $0x128] sm:$0xff] %v1539
        %1795 = vst [vmem:[%s274 + $0x130] sm:$0xff] %v1544
        %1796 = vst [vmem:[%s274 + $0x138] sm:$0xff] %v1549
        %1797 = vst [vmem:[%s274 + $0x140] sm:$0xff] %v1554
        %1798 = vst [vmem:[%s274 + $0x148] sm:$0xff] %v1559
        %1799 = vst [vmem:[%s274 + $0x150] sm:$0xff] %v1564
        %1800 = vst [vmem:[%s274 + $0x158] sm:$0xff] %v1569
        %1801 = vst [vmem:[%s274 + $0x160] sm:$0xff] %v1574
        %1802 = vst [vmem:[%s274 + $0x168] sm:$0xff] %v1579
        %1803 = vst [vmem:[%s274 + $0x170] sm:$0xff] %v1584
        %1804 = vst [vmem:[%s274 + $0x178] sm:$0xff] %v1589
        %1805 = vst [vmem:[%s274 + $0x180] sm:$0xff] %v1594
        %1806 = vst [vmem:[%s274 + $0x188] sm:$0xff] %v1599
        %1807 = vst [vmem:[%s274 + $0x190] sm:$0xff] %v1604
        %1808 = vst [vmem:[%s274 + $0x198] sm:$0xff] %v1609
        %1809 = vst [vmem:[%s274 + $0x1a0] sm:$0xff] %v1614
        %1810 = vst [vmem:[%s274 + $0x1a8] sm:$0xff] %v1619
        %1811 = vst [vmem:[%s274 + $0x1b0] sm:$0xff] %v1624
        %1812 = vst [vmem:[%s274 + $0x1b8] sm:$0xff] %v1629
        %1813 = vst [vmem:[%s274 + $0x1c0] sm:$0xff] %v1634
        %1814 = vst [vmem:[%s274 + $0x1c8] sm:$0xff] %v1639
        %1815 = vst [vmem:[%s274 + $0x1d0] sm:$0xff] %v1644
        %1816 = vst [vmem:[%s274 + $0x1d8] sm:$0xff] %v1649
        %1817 = vst [vmem:[%s274 + $0x1e0] sm:$0xff] %v1654
        %1818 = vst [vmem:[%s274 + $0x1e8] sm:$0xff] %v1659
        %1819 = vst [vmem:[%s274 + $0x1f0] sm:$0xff] %v1664
        %1820 = vst [vmem:[%s274 + $0x1f8] sm:$0xff] %v1669
        %1821 = vst [vmem:[%s274 + $0x200] sm:$0xff] %v1674
        %1822 = vst [vmem:[%s274 + $0x208] sm:$0xff] %v1679
        %1823 = vst [vmem:[%s274 + $0x210] sm:$0xff] %v1684
        %1824 = vst [vmem:[%s274 + $0x218] sm:$0xff] %v1689
        %1825 = vst [vmem:[%s274 + $0x220] sm:$0xff] %v1694
        %1826 = vst [vmem:[%s274 + $0x228] sm:$0xff] %v1699
        %1827 = vst [vmem:[%s274 + $0x230] sm:$0xff] %v1704
        %1828 = vst [vmem:[%s274 + $0x238] sm:$0xff] %v1709
        %1829 = vst [vmem:[%s274 + $0x240] sm:$0xff] %v1714
        %1830 = vst [vmem:[%s274 + $0x248] sm:$0xff] %v1719
        %1831 = vst [vmem:[%s274 + $0x250] sm:$0xff] %v1724
        %1832 = vst [vmem:[%s274 + $0x258] sm:$0xff] %v1729
        %1833 = vst [vmem:[%s274 + $0x260] sm:$0xff] %v1734
        %1834 = vst [vmem:[%s274 + $0x268] sm:$0xff] %v1739
        %1835 = vst [vmem:[%s274 + $0x270] sm:$0xff] %v1744
        %1836 = vst [vmem:[%s274 + $0x278] sm:$0xff] %v1749
        %1837 = vst [vmem:[%s274 + $0x280] sm:$0xff] %v1754
        %s1838 = sand.u32 %s157, 1
        %s1839 = scalar_lea.sflag [#allocation4], %s1838
        %s1840 = sand.u32 %s157, 1
        %s1841 = smul.addr %s1840, 648
        %s1842 = scalar_lea.vmem [#allocation7], %s1841
        // Predicated region
        $region49: #{tpu_custom_call.1} parent=39 // pred_check
          %p1843 = pneg %p167
        $region50: #{tpu_custom_call.1} parent=39 // pred_check_branch
          %1845 = sbr.rel (%p1843) target = $region52
        $region51: #{tpu_custom_call.1} parent=39 // pred_region
          %s1847 = ssub.s32 10368, 10368
          %1848 = vsyncadd %s1839, %s1847
          %s1849 = smul.addr %s27, 162
          %s1850 = sadd.s32 %s28, %s1849
          %s1851 = smul.addr %s1850, 128
          %s1852 = scalar_lea.hbm %s5, %s1851
          %s1853 = sshll.u32 %s1842, 4
          %s1854 = int_to_ptr.vmem [resolvable:$true] %s1853
          %1859 = dma.vmem_to_hbm [thread:$0]  %s1854, 10368, %s1852, %s1839, 128, 256, 8
        $region52: #{tpu_custom_call.1} parent=39 // pred_fallthru
          _
      $region40: #{tpu_custom_call.1} parent=5 // pred_fallthru
        _
      %p1860 = scmp.le.s32.totalorder 2, %s18
      // Predicated region
      $region53: #{tpu_custom_call.1} parent=5 // pred_check
        %p1861 = pneg %p1860
      $region54: #{tpu_custom_call.1} parent=5 // pred_check_branch
        %1863 = sbr.rel (%p1861) target = $region56
      $region55: #{tpu_custom_call.1} parent=5 // pred_region
        %s1864 = ssub.s32 %s18, 2
        // Predicated region
        $region57: #{tpu_custom_call.1} parent=55 // pred_check
          %p1865 = pneg %p173
        $region58: #{tpu_custom_call.1} parent=55 // pred_check_branch
          %1867 = sbr.rel (%p1865) target = $region60
        $region59: #{tpu_custom_call.1} parent=55 // pred_region
          %s1868 = sand.u32 %s158, 1
          %s1869 = scalar_lea.sflag [#allocation4], %s1868
          %s1870 = sand.u32 %s158, 1
          %s1871 = smul.addr %s1870, 648
          %s1872 = scalar_lea.vmem [#allocation7], %s1871
          %1873 = dma.done %s1869, 10368
        $region60: #{tpu_custom_call.1} parent=55 // pred_fallthru
          _
      $region56: #{tpu_custom_call.1} parent=5 // pred_fallthru
        _
    $region6: #{tpu_custom_call.1} parent=1 // loop_footer
      %s22 = sadd.s32 1, %s18
    $region7: #{tpu_custom_call.1} parent=1 // loop_footer_branch
      %17 = sbr.rel target = $region3
    $region8: #{tpu_custom_call.1} parent=1 // loop_exit
      _
    %1874 = vsyncpa [#allocation3], 1
    %s1875 = scalar_lea.sflag [#allocation3], 1
    %1876 = vsyncpa %s1875, 1
    %1877 = vsyncpa [#allocation6], 1
    %1878 = vsyncpa [#allocation4], 1
    %s1879 = scalar_lea.sflag [#allocation4], 1
    %1880 = vsyncpa %s1879, 1

</llo_original>
